<compile_context>
chip_gen: v7x
topology: tpu7x:2x2x1
jax: 0.10.0
libtpu: 0.0.40
codegen_flags: <defaults>
</compile_context>

<pallas_src>
import functools

import numpy as np
import jax
import jax.numpy as jnp
from jax.experimental import pallas as pl
from jax.experimental.pallas import tpu as pltpu


# ----------------------------------------------------------------------------
# helpers
# ----------------------------------------------------------------------------
def _full_specs(arrays):
    """Whole-array blocks (all tensors here are small 2-D [rows, features])."""
    return [pl.BlockSpec(a.shape, lambda i: (0, 0)) for a in arrays]


_ARB = pltpu.CompilerParams(dimension_semantics=("arbitrary",))


# ----------------------------------------------------------------------------
# Pallas kernels
# ----------------------------------------------------------------------------
def _deepgcfx_core_kernel(
        x_ref, pool_ref, expand_ref,
        w_nm_ref, b_nm_ref, w_nl_ref, b_nl_ref,
        w_gm_ref, b_gm_ref, w_gl_ref, b_gl_ref,
        w_fus_g_ref, w_fus_n_ref, b_fus_ref,
        eps_node_ref, eps_gnode_ref, eps_graph_ref,
        gl_nodes_ref, gnode_lat_ref, node_lat_ref, graph_lat_ref,
        kl_node_ref, kl_graph_ref,
        *, inv_n_nodes, inv_num_graphs):
    """Fused encoder heads + pooling + KL + reparam + expansion + fusioner."""
    f32 = jnp.float32
    x = x_ref[...]                                     # [N, F] loaded once

    # ---- fused encoder heads (single launch; x stays VMEM-resident) --------
    # NOTE: with the hidden dim padded to 128 these four dots collapse into
    # one lane-dense [F, 4H] matmul; kept as four H-wide dots at H=32 to
    # avoid lane-subtile splits of the result.
    node_mu = jnp.dot(x, w_nm_ref[...], preferred_element_type=f32) + b_nm_ref[...]
    node_lv = jnp.dot(x, w_nl_ref[...], preferred_element_type=f32) + b_nl_ref[...]
    gnode_mu = jnp.dot(x, w_gm_ref[...], preferred_element_type=f32) + b_gm_ref[...]
    gnode_lv = jnp.dot(x, w_gl_ref[...], preferred_element_type=f32) + b_gl_ref[...]

    # ---- per-graph mean pooling on the MXU (replaces XLA segment_sum) ------
    pool = pool_ref[...]                               # [G, N] normalized one-hot
    graph_mu = jnp.dot(pool, node_mu, preferred_element_type=f32)
    graph_lv = jnp.dot(pool, node_lv, preferred_element_type=f32)

    # ---- KL divergences in the same pass (no HBM round trip of mu/logvar) --
    row_n = jnp.sum(1.0 + 2.0 * node_lv - node_mu * node_mu
                    - jnp.exp(node_lv) ** 2, axis=1, keepdims=True)       # [N,1]
    kl_node_ref[...] = (-0.5 * inv_n_nodes) * jnp.mean(row_n, axis=0,
                                                       keepdims=True)
    row_g = jnp.sum(1.0 + 2.0 * graph_lv - graph_mu * graph_mu
                    - jnp.exp(graph_lv) ** 2, axis=1, keepdims=True)      # [G,1]
    kl_graph_ref[...] = 0.1 * (-0.5 * inv_num_graphs) * jnp.mean(
        row_g, axis=0, keepdims=True)

    # ---- reparameterization (elementwise; exp overlaps MXU work) -----------
    node_lat = node_mu + eps_node_ref[...] * jnp.exp(0.5 * node_lv)
    gnode_lat = gnode_mu + eps_gnode_ref[...] * jnp.exp(0.5 * gnode_lv)
    graph_lat = graph_mu + eps_graph_ref[...] * jnp.exp(0.5 * graph_lv)

    # ---- expand graph latent back to nodes (one-hot matmul == repeat) ------
    graph_exp = jnp.dot(expand_ref[...], graph_lat, preferred_element_type=f32)

    # ---- fusioner: Linear(2H->H) + ReLU expressed as two H-wide dots
    #      (concat([a, b]) @ W == a @ W[:H] + b @ W[H:]; no in-kernel concat) -
    gl = (jnp.dot(graph_exp, w_fus_g_ref[...], preferred_element_type=f32)
          + jnp.dot(node_lat, w_fus_n_ref[...], preferred_element_type=f32)
          + b_fus_ref[...])
    gl_nodes_ref[...] = jnp.maximum(gl, 0.0)
    gnode_lat_ref[...] = gnode_lat
    node_lat_ref[...] = node_lat
    graph_lat_ref[...] = graph_lat


def _edge_bce_pair_kernel(gl_ps_ref, gl_pd_ref, gl_ns_ref, gl_nd_ref,
                          g_ps_ref, g_pd_ref, g_ns_ref, g_nd_ref,
                          loss_gl_ref, loss_g_ref):
    """Both edge-reconstruction BCE losses (pos + neg) in a single launch.

    Uses the stable identities:
      -mean(log(sigmoid(v)))     == mean(softplus(-v))
      -mean(log(1 - sigmoid(v))) == mean(softplus(v))
    with softplus(x) = max(x, 0) + log(1 + exp(-|x|)).
    """
    def _mean_softplus(src_ref, dst_ref, sign):
        v = jnp.sum(src_ref[...] * dst_ref[...], axis=1, keepdims=True)   # [E,1]
        sp = jnp.maximum(sign * v, 0.0) + jnp.log(1.0 + jnp.exp(-jnp.abs(v)))
        return jnp.mean(sp, axis=0, keepdims=True)                        # [1,1]

    loss_gl_ref[...] = (_mean_softplus(gl_ps_ref, gl_pd_ref, -1.0)
                        + _mean_softplus(gl_ns_ref, gl_nd_ref, 1.0))
    loss_g_ref[...] = (_mean_softplus(g_ps_ref, g_pd_ref, -1.0)
                       + _mean_softplus(g_ns_ref, g_nd_ref, 1.0))


def _ff_kernel(x_ref, w1_ref, b1_ref, w2_ref, b2_ref, w3_ref, b3_ref,
               ws_ref, bs_ref, o_ref):
    """FF module: 3x(Linear+ReLU) + Linear shortcut, one launch."""
    f32 = jnp.float32
    x = x_ref[...]
    h = jnp.maximum(jnp.dot(x, w1_ref[...], preferred_element_type=f32)
                    + b1_ref[...], 0.0)
    h = jnp.maximum(jnp.dot(h, w2_ref[...], preferred_element_type=f32)
                    + b2_ref[...], 0.0)
    h = jnp.maximum(jnp.dot(h, w3_ref[...], preferred_element_type=f32)
                    + b3_ref[...], 0.0)
    sc = jnp.dot(x, ws_ref[...], preferred_element_type=f32) + bs_ref[...]
    # NOTE: w1 and the shortcut weight could be fused into one [H, 2H] matmul
    # once H is padded to a lane-dense width; kept separate at H=32.
    o_ref[...] = h + sc


# ----------------------------------------------------------------------------
# Pallas wrappers (grid=(1,) whole-array blocks at these toy sizes)
# ----------------------------------------------------------------------------
def deepgcfx_core_pallas(x, pool, expand,
                         w_nm, b_nm, w_nl, b_nl, w_gm, b_gm, w_gl, b_gl,
                         w_fus_g, w_fus_n, b_fus,
                         eps_node, eps_gnode, eps_graph):
    n_nodes = x.shape[0]
    num_graphs = pool.shape[0]
    hidden = w_nm.shape[1]
    args = (x, pool, expand, w_nm, b_nm, w_nl, b_nl, w_gm, b_gm, w_gl, b_gl,
            w_fus_g, w_fus_n, b_fus, eps_node, eps_gnode, eps_graph)
    out_shape = (
        jax.ShapeDtypeStruct((n_nodes, hidden), jnp.float32),     # gl_nodes
        jax.ShapeDtypeStruct((n_nodes, hidden), jnp.float32),     # gnode_lat
        jax.ShapeDtypeStruct((n_nodes, hidden), jnp.float32),     # node_lat
        jax.ShapeDtypeStruct((num_graphs, hidden), jnp.float32),  # graph_lat
        jax.ShapeDtypeStruct((1, 1), jnp.float32),                # node KL
        jax.ShapeDtypeStruct((1, 1), jnp.float32),                # graph KL
    )
    out_specs = tuple(pl.BlockSpec(s.shape, lambda i: (0, 0)) for s in out_shape)
    kern = functools.partial(_deepgcfx_core_kernel,
                             inv_n_nodes=1.0 / n_nodes,
                             inv_num_graphs=1.0 / num_graphs)
    return pl.pallas_call(
        kern,
        out_shape=out_shape,
        grid=(1,),
        in_specs=_full_specs(args),
        out_specs=out_specs,
        compiler_params=_ARB,
    )(*args)


def edge_recon_losses_pallas(z_gl, z_g, pos_edge, neg_edge_gl, neg_edge_g):
    # Edge-endpoint gathers stay in XLA for now.
    # TODO(synk): at large edge counts, gather rows in-kernel from HBM via
    # scalar-prefetched edge indices to avoid materializing [E, H] arrays.
    args = (jnp.take(z_gl, pos_edge[0], axis=0),
            jnp.take(z_gl, pos_edge[1], axis=0),
            jnp.take(z_gl, neg_edge_gl[0], axis=0),
            jnp.take(z_gl, neg_edge_gl[1], axis=0),
            jnp.take(z_g, pos_edge[0], axis=0),
            jnp.take(z_g, pos_edge[1], axis=0),
            jnp.take(z_g, neg_edge_g[0], axis=0),
            jnp.take(z_g, neg_edge_g[1], axis=0))
    out_shape = (jax.ShapeDtypeStruct((1, 1), jnp.float32),
                 jax.ShapeDtypeStruct((1, 1), jnp.float32))
    out_specs = tuple(pl.BlockSpec((1, 1), lambda i: (0, 0)) for _ in range(2))
    loss_gl, loss_g = pl.pallas_call(
        _edge_bce_pair_kernel,
        out_shape=out_shape,
        grid=(1,),
        in_specs=_full_specs(args),
        out_specs=out_specs,
        compiler_params=_ARB,
    )(*args)
    return loss_gl[0, 0], loss_g[0, 0]


def ff_pallas(x, w1, b1, w2, b2, w3, b3, ws, bs):
    n, h = x.shape
    args = (x, w1, b1, w2, b2, w3, b3, ws, bs)
    return pl.pallas_call(
        _ff_kernel,
        out_shape=jax.ShapeDtypeStruct((n, h), jnp.float32),
        grid=(1,),
        in_specs=_full_specs(args),
        out_specs=pl.BlockSpec((n, h), lambda i: (0, 0)),
        compiler_params=_ARB,
    )(*args)


# ----------------------------------------------------------------------------
# Parameters (deterministic xavier-uniform weights + zero biases, as init_emb)
# ----------------------------------------------------------------------------
def xavier_uniform(key, fan_in, fan_out):
    limit = float(np.sqrt(6.0 / (fan_in + fan_out)))
    return jax.random.uniform(key, (fan_in, fan_out), jnp.float32, -limit, limit)


def init_params(key, f_dim, h):
    keys = iter(jax.random.split(key, 64))
    p = {}

    def lin(fan_in, fan_out):
        w = xavier_uniform(next(keys), fan_in, fan_out)
        b = jnp.zeros((1, fan_out), jnp.float32)
        return w, b

    # TODO(synk): Encoder class was not provided in the reference code; stand-in
    # encoder = per-node linear heads for (mu, logvar) x (node, graph-node) +
    # per-graph mean pooling.  Stored as a single fused [F, 4H] parameter.
    ws, bs = zip(*[lin(f_dim, h) for _ in range(4)])
    p["enc_w"] = jnp.concatenate(ws, axis=1)     # [F, 4H]
    p["enc_b"] = jnp.concatenate(bs, axis=1)     # [1, 4H]

    # TODO(synk): FCNet class not provided; modeled as Linear(2H -> H) + ReLU.
    p["fus_w"], p["fus_b"] = lin(2 * h, h)

    # FF projection heads (g_proj / n_proj); g_accum / bn_class unused in forward.
    for name in ("g_proj", "n_proj"):
        for part in ("w1", "w2", "w3", "ws"):
            p[f"{name}_{part}"], p[f"{name}_{part.replace('w', 'b')}"] = lin(h, h)
    return p


# ----------------------------------------------------------------------------
# Negative sampling glue (mirrors remove_self_loops -> add_self_loops ->
# negative_sampling); deterministic rejection sampling on the host.
# ----------------------------------------------------------------------------
def sample_negative_edges(edge_index, num_nodes, seed):
    # TODO(synk): torch_geometric.negative_sampling not reproduced bit-exactly;
    # deterministic rejection-sampling stand-in with the same edge count.
    mask = edge_index[0] != edge_index[1]
    pos = edge_index[:, mask]
    loops = np.stack([np.arange(num_nodes, dtype=np.int32)] * 2)
    pos = np.concatenate([pos, loops], axis=1)
    existing = set(map(tuple, pos.T.tolist()))
    rng = np.random.RandomState(seed)
    num_neg = pos.shape[1]
    neg = []
    while len(neg) < num_neg:
        a = int(rng.randint(num_nodes))
        b = int(rng.randint(num_nodes))
        if a == b or (a, b) in existing:
            continue
        neg.append((a, b))
    return np.array(neg, dtype=np.int32).T


# ----------------------------------------------------------------------------
# deepGCFX forward
# ----------------------------------------------------------------------------
@functools.partial(jax.jit, static_argnames=("num_graphs",))
def deep_gcfx_forward(params, x, edge_index, neg_edge_gl, neg_edge_g,
                      batch, num_graphs, noise_key):
    n_nodes = x.shape[0]
    hidden = params["fus_w"].shape[1]

    # ---- pooling / expansion one-hot matrices from batch (sorted batch) ----
    one_hot = (batch[:, None] == jnp.arange(num_graphs)[None, :]).astype(jnp.float32)
    counts = jnp.maximum(jnp.sum(one_hot, axis=0), 1.0)    # guard empty graphs
    pool = (one_hot / counts[None, :]).T                   # [G, N] mean pooling
    expand = one_hot                                       # [N, G] repeat_interleave

    # ---- reparameterization noise (host PRNG keeps this deterministic) -----
    # TODO(synk): draw in-kernel via pltpu.prng_seed/prng_random_bits at scale.
    k1, k2, k3 = jax.random.split(noise_key, 3)
    eps_node = jax.random.normal(k1, (n_nodes, hidden), jnp.float32)
    eps_gnode = jax.random.normal(k2, (n_nodes, hidden), jnp.float32)
    eps_graph = jax.random.normal(k3, (num_graphs, hidden), jnp.float32)

    # ---- split fused parameters (XLA-side, free) ----------------------------
    w_nm, w_nl, w_gm, w_gl = jnp.split(params["enc_w"], 4, axis=1)
    b_nm, b_nl, b_gm, b_gl = jnp.split(params["enc_b"], 4, axis=1)
    w_fus_g = params["fus_w"][:hidden, :]
    w_fus_n = params["fus_w"][hidden:, :]

    # ---- fused encoder / KL / reparam / pooling / fusioner (one launch) ----
    (gl_nodes, gnode_lat, node_lat, graph_lat,
     kl_node, kl_graph) = deepgcfx_core_pallas(
        x, pool, expand,
        w_nm, b_nm, w_nl, b_nl, w_gm, b_gm, w_gl, b_gl,
        w_fus_g, w_fus_n, params["fus_b"],
        eps_node, eps_gnode, eps_graph)

    node_kl_divergence_loss = kl_node[0, 0]
    graph_kl_divergence_loss = kl_graph[0, 0]

    # ---- edge reconstruction losses (pos + neg, both latents, one launch) --
    edge_recon_loss_gl, edge_recon_loss_g = edge_recon_losses_pallas(
        gl_nodes, gnode_lat, edge_index, neg_edge_gl, neg_edge_g)

    # FF projection heads: the contrastive branch is commented out in the
    # original forward, so these do not contribute to the returned losses.
    _g_rep = ff_pallas(graph_lat,
                       params["g_proj_w1"], params["g_proj_b1"],
                       params["g_proj_w2"], params["g_proj_b2"],
                       params["g_proj_w3"], params["g_proj_b3"],
                       params["g_proj_ws"], params["g_proj_bs"])
    _n_rep = ff_pallas(node_lat,
                       params["n_proj_w1"], params["n_proj_b1"],
                       params["n_proj_w2"], params["n_proj_b2"],
                       params["n_proj_w3"], params["n_proj_b3"],
                       params["n_proj_ws"], params["n_proj_bs"])

    # TODO(synk): original forward calls loss.backward(); gradients are out of
    # scope for this forward-pass kernel implementation.
    return (node_kl_divergence_loss, graph_kl_divergence_loss, jnp.float32(0.0),
            edge_recon_loss_gl, edge_recon_loss_g)


# ----------------------------------------------------------------------------
if __name__ == "__main__":
    key = jax.random.PRNGKey(0)
    k_x, k_params, k_noise = jax.random.split(key, 3)

    N_NODES, F_DIM, HIDDEN, NUM_GRAPHS = 16, 8, 32, 2

    x = jax.random.normal(k_x, (N_NODES, F_DIM), jnp.float32)
    batch_np = np.repeat(np.arange(NUM_GRAPHS, dtype=np.int32),
                         N_NODES // NUM_GRAPHS)
    batch = jnp.asarray(batch_np)

    # bidirectional ring edges inside each graph
    src, dst = [], []
    per = N_NODES // NUM_GRAPHS
    for g in range(NUM_GRAPHS):
        base = g * per
        for i in range(per):
            a, b = base + i, base + (i + 1) % per
            src += [a, b]
            dst += [b, a]
    edge_index_np = np.array([src, dst], dtype=np.int32)

    neg_gl_np = sample_negative_edges(edge_index_np, N_NODES, seed=0)
    neg_g_np = sample_negative_edges(edge_index_np, N_NODES, seed=1)

    params = init_params(k_params, F_DIM, HIDDEN)

    out = deep_gcfx_forward(
        params,
        x,
        jnp.asarray(edge_index_np),
        jnp.asarray(neg_gl_np),
        jnp.asarray(neg_g_np),
        batch,
        num_graphs=NUM_GRAPHS,
        noise_key=k_noise,
    )
    out = jax.block_until_ready(out)
    _ = [float(v) for v in out]
    print("KERNEL_OK")
</pallas_src>

<mosaic_0001>
module attributes {stable_mosaic.version = 11 : i64} {
  func.func @_deepgcfx_core_kernel(%arg0: i32, %arg1: memref<16x8xf32, #tpu.memory_space<vmem>>, %arg2: memref<2x16xf32, #tpu.memory_space<vmem>>, %arg3: memref<16x2xf32, #tpu.memory_space<vmem>>, %arg4: memref<8x32xf32, #tpu.memory_space<vmem>>, %arg5: memref<1x32xf32, #tpu.memory_space<vmem>>, %arg6: memref<8x32xf32, #tpu.memory_space<vmem>>, %arg7: memref<1x32xf32, #tpu.memory_space<vmem>>, %arg8: memref<8x32xf32, #tpu.memory_space<vmem>>, %arg9: memref<1x32xf32, #tpu.memory_space<vmem>>, %arg10: memref<8x32xf32, #tpu.memory_space<vmem>>, %arg11: memref<1x32xf32, #tpu.memory_space<vmem>>, %arg12: memref<32x32xf32, #tpu.memory_space<vmem>>, %arg13: memref<32x32xf32, #tpu.memory_space<vmem>>, %arg14: memref<1x32xf32, #tpu.memory_space<vmem>>, %arg15: memref<16x32xf32, #tpu.memory_space<vmem>>, %arg16: memref<16x32xf32, #tpu.memory_space<vmem>>, %arg17: memref<2x32xf32, #tpu.memory_space<vmem>>, %arg18: memref<16x32xf32, #tpu.memory_space<vmem>>, %arg19: memref<16x32xf32, #tpu.memory_space<vmem>>, %arg20: memref<16x32xf32, #tpu.memory_space<vmem>>, %arg21: memref<2x32xf32, #tpu.memory_space<vmem>>, %arg22: memref<1x1xf32, #tpu.memory_space<vmem>>, %arg23: memref<1x1xf32, #tpu.memory_space<vmem>>) attributes {dimension_semantics = [#tpu.dimension_semantics<arbitrary>], iteration_bounds = array<i64: 1>, scalar_prefetch = 0 : i64, scratch_operands = 0 : i64, tpu.core_type = #tpu.core_type<tc>, window_params = [{pipeline_mode = #tpu.pipeline_mode<synchronous>, transform_indices = @transform_0, window_bounds = array<i64: 16, 8>}, {pipeline_mode = #tpu.pipeline_mode<synchronous>, transform_indices = @transform_1, window_bounds = array<i64: 2, 16>}, {pipeline_mode = #tpu.pipeline_mode<synchronous>, transform_indices = @transform_2, window_bounds = array<i64: 16, 2>}, {pipeline_mode = #tpu.pipeline_mode<synchronous>, transform_indices = @transform_3, window_bounds = array<i64: 8, 32>}, {pipeline_mode = #tpu.pipeline_mode<synchronous>, transform_indices = @transform_4, window_bounds = array<i64: 1, 32>}, {pipeline_mode = #tpu.pipeline_mode<synchronous>, transform_indices = @transform_5, window_bounds = array<i64: 8, 32>}, {pipeline_mode = #tpu.pipeline_mode<synchronous>, transform_indices = @transform_6, window_bounds = array<i64: 1, 32>}, {pipeline_mode = #tpu.pipeline_mode<synchronous>, transform_indices = @transform_7, window_bounds = array<i64: 8, 32>}, {pipeline_mode = #tpu.pipeline_mode<synchronous>, transform_indices = @transform_8, window_bounds = array<i64: 1, 32>}, {pipeline_mode = #tpu.pipeline_mode<synchronous>, transform_indices = @transform_9, window_bounds = array<i64: 8, 32>}, {pipeline_mode = #tpu.pipeline_mode<synchronous>, transform_indices = @transform_10, window_bounds = array<i64: 1, 32>}, {pipeline_mode = #tpu.pipeline_mode<synchronous>, transform_indices = @transform_11, window_bounds = array<i64: 32, 32>}, {pipeline_mode = #tpu.pipeline_mode<synchronous>, transform_indices = @transform_12, window_bounds = array<i64: 32, 32>}, {pipeline_mode = #tpu.pipeline_mode<synchronous>, transform_indices = @transform_13, window_bounds = array<i64: 1, 32>}, {pipeline_mode = #tpu.pipeline_mode<synchronous>, transform_indices = @transform_14, window_bounds = array<i64: 16, 32>}, {pipeline_mode = #tpu.pipeline_mode<synchronous>, transform_indices = @transform_15, window_bounds = array<i64: 16, 32>}, {pipeline_mode = #tpu.pipeline_mode<synchronous>, transform_indices = @transform_16, window_bounds = array<i64: 2, 32>}, {pipeline_mode = #tpu.pipeline_mode<synchronous>, transform_indices = @transform_17, window_bounds = array<i64: 16, 32>}, {pipeline_mode = #tpu.pipeline_mode<synchronous>, transform_indices = @transform_18, window_bounds = array<i64: 16, 32>}, {pipeline_mode = #tpu.pipeline_mode<synchronous>, transform_indices = @transform_19, window_bounds = array<i64: 16, 32>}, {pipeline_mode = #tpu.pipeline_mode<synchronous>, transform_indices = @transform_20, window_bounds = array<i64: 2, 32>}, {pipeline_mode = #tpu.pipeline_mode<synchronous>, transform_indices = @transform_21, window_bounds = array<i64: 1, 1>}, {pipeline_mode = #tpu.pipeline_mode<synchronous>, transform_indices = @transform_22, window_bounds = array<i64: 1, 1>}]} {
    %c0 = arith.constant 0 : index
    %c0_0 = arith.constant 0 : index
    %0 = vector.load %arg1[%c0, %c0_0] : memref<16x8xf32, #tpu.memory_space<vmem>>, vector<16x8xf32>
    %c0_1 = arith.constant 0 : index
    %c0_2 = arith.constant 0 : index
    %1 = vector.load %arg4[%c0_1, %c0_2] : memref<8x32xf32, #tpu.memory_space<vmem>>, vector<8x32xf32>
    %cst = arith.constant dense<0.000000e+00> : vector<16x32xf32>
    %2 = tpu.matmul %0, %1, %cst {dimension_numbers = #tpu.dot_dimension_numbers<[1], [0], [0], [1], [0, 0, 1, 1], [], []>} : vector<16x8xf32>, vector<8x32xf32>, vector<16x32xf32> -> vector<16x32xf32>
    %c0_3 = arith.constant 0 : index
    %c0_4 = arith.constant 0 : index
    %3 = vector.load %arg5[%c0_3, %c0_4] : memref<1x32xf32, #tpu.memory_space<vmem>>, vector<1x32xf32>
    %4 = vector.broadcast %3 : vector<1x32xf32> to vector<16x32xf32>
    %5 = arith.addf %2, %4 : vector<16x32xf32>
    %c0_5 = arith.constant 0 : index
    %c0_6 = arith.constant 0 : index
    %6 = vector.load %arg6[%c0_5, %c0_6] : memref<8x32xf32, #tpu.memory_space<vmem>>, vector<8x32xf32>
    %cst_7 = arith.constant dense<0.000000e+00> : vector<16x32xf32>
    %7 = tpu.matmul %0, %6, %cst_7 {dimension_numbers = #tpu.dot_dimension_numbers<[1], [0], [0], [1], [0, 0, 1, 1], [], []>} : vector<16x8xf32>, vector<8x32xf32>, vector<16x32xf32> -> vector<16x32xf32>
    %c0_8 = arith.constant 0 : index
    %c0_9 = arith.constant 0 : index
    %8 = vector.load %arg7[%c0_8, %c0_9] : memref<1x32xf32, #tpu.memory_space<vmem>>, vector<1x32xf32>
    %9 = vector.broadcast %8 : vector<1x32xf32> to vector<16x32xf32>
    %10 = arith.addf %7, %9 : vector<16x32xf32>
    %c0_10 = arith.constant 0 : index
    %c0_11 = arith.constant 0 : index
    %11 = vector.load %arg8[%c0_10, %c0_11] : memref<8x32xf32, #tpu.memory_space<vmem>>, vector<8x32xf32>
    %cst_12 = arith.constant dense<0.000000e+00> : vector<16x32xf32>
    %12 = tpu.matmul %0, %11, %cst_12 {dimension_numbers = #tpu.dot_dimension_numbers<[1], [0], [0], [1], [0, 0, 1, 1], [], []>} : vector<16x8xf32>, vector<8x32xf32>, vector<16x32xf32> -> vector<16x32xf32>
    %c0_13 = arith.constant 0 : index
    %c0_14 = arith.constant 0 : index
    %13 = vector.load %arg9[%c0_13, %c0_14] : memref<1x32xf32, #tpu.memory_space<vmem>>, vector<1x32xf32>
    %14 = vector.broadcast %13 : vector<1x32xf32> to vector<16x32xf32>
    %15 = arith.addf %12, %14 : vector<16x32xf32>
    %c0_15 = arith.constant 0 : index
    %c0_16 = arith.constant 0 : index
    %16 = vector.load %arg10[%c0_15, %c0_16] : memref<8x32xf32, #tpu.memory_space<vmem>>, vector<8x32xf32>
    %cst_17 = arith.constant dense<0.000000e+00> : vector<16x32xf32>
    %17 = tpu.matmul %0, %16, %cst_17 {dimension_numbers = #tpu.dot_dimension_numbers<[1], [0], [0], [1], [0, 0, 1, 1], [], []>} : vector<16x8xf32>, vector<8x32xf32>, vector<16x32xf32> -> vector<16x32xf32>
    %c0_18 = arith.constant 0 : index
    %c0_19 = arith.constant 0 : index
    %18 = vector.load %arg11[%c0_18, %c0_19] : memref<1x32xf32, #tpu.memory_space<vmem>>, vector<1x32xf32>
    %19 = vector.broadcast %18 : vector<1x32xf32> to vector<16x32xf32>
    %20 = arith.addf %17, %19 : vector<16x32xf32>
    %c0_20 = arith.constant 0 : index
    %c0_21 = arith.constant 0 : index
    %21 = vector.load %arg2[%c0_20, %c0_21] : memref<2x16xf32, #tpu.memory_space<vmem>>, vector<2x16xf32>
    %cst_22 = arith.constant dense<0.000000e+00> : vector<2x32xf32>
    %22 = tpu.matmul %21, %5, %cst_22 {dimension_numbers = #tpu.dot_dimension_numbers<[1], [0], [0], [1], [0, 0, 1, 1], [], []>} : vector<2x16xf32>, vector<16x32xf32>, vector<2x32xf32> -> vector<2x32xf32>
    %cst_23 = arith.constant dense<0.000000e+00> : vector<2x32xf32>
    %23 = tpu.matmul %21, %10, %cst_23 {dimension_numbers = #tpu.dot_dimension_numbers<[1], [0], [0], [1], [0, 0, 1, 1], [], []>} : vector<2x16xf32>, vector<16x32xf32>, vector<2x32xf32> -> vector<2x32xf32>
    %cst_24 = arith.constant 2.000000e+00 : f32
    %24 = vector.broadcast %cst_24 : f32 to vector<16x32xf32>
    %25 = arith.mulf %24, %10 : vector<16x32xf32>
    %cst_25 = arith.constant 1.000000e+00 : f32
    %26 = vector.broadcast %cst_25 : f32 to vector<16x32xf32>
    %27 = arith.addf %26, %25 : vector<16x32xf32>
    %28 = arith.mulf %5, %5 : vector<16x32xf32>
    %29 = arith.subf %27, %28 : vector<16x32xf32>
    %30 = math.exp %10 : vector<16x32xf32>
    %31 = arith.mulf %30, %30 : vector<16x32xf32>
    %32 = arith.subf %29, %31 : vector<16x32xf32>
    %cst_26 = arith.constant dense<0.000000e+00> : vector<16xf32>
    %33 = vector.multi_reduction <add>, %32, %cst_26 [1] : vector<16x32xf32> to vector<16xf32>
    %34 = vector.shape_cast %33 : vector<16xf32> to vector<16x1xf32>
    %cst_27 = arith.constant dense<0.000000e+00> : vector<1xf32>
    %35 = vector.multi_reduction <add>, %34, %cst_27 [0] : vector<16x1xf32> to vector<1xf32>
    %36 = vector.shape_cast %35 : vector<1xf32> to vector<1x1xf32>
    %cst_28 = arith.constant 1.600000e+01 : f32
    %37 = vector.broadcast %cst_28 : f32 to vector<1x1xf32>
    %38 = arith.divf %36, %37 : vector<1x1xf32>
    %cst_29 = arith.constant -3.125000e-02 : f32
    %39 = vector.broadcast %cst_29 : f32 to vector<1x1xf32>
    %40 = arith.mulf %39, %38 : vector<1x1xf32>
    %c0_30 = arith.constant 0 : index
    %c0_31 = arith.constant 0 : index
    %41 = vector.load %arg22[%c0_30, %c0_31] : memref<1x1xf32, #tpu.memory_space<vmem>>, vector<1x1xf32>
    tpu.vector_store %arg22[%c0_30, %c0_31], %40 {strides = array<i32>} : memref<1x1xf32, #tpu.memory_space<vmem>>, vector<1x1xf32>,
    %cst_32 = arith.constant 2.000000e+00 : f32
    %42 = vector.broadcast %cst_32 : f32 to vector<2x32xf32>
    %43 = arith.mulf %42, %23 : vector<2x32xf32>
    %cst_33 = arith.constant 1.000000e+00 : f32
    %44 = vector.broadcast %cst_33 : f32 to vector<2x32xf32>
    %45 = arith.addf %44, %43 : vector<2x32xf32>
    %46 = arith.mulf %22, %22 : vector<2x32xf32>
    %47 = arith.subf %45, %46 : vector<2x32xf32>
    %48 = math.exp %23 : vector<2x32xf32>
    %49 = arith.mulf %48, %48 : vector<2x32xf32>
    %50 = arith.subf %47, %49 : vector<2x32xf32>
    %cst_34 = arith.constant dense<0.000000e+00> : vector<2xf32>
    %51 = vector.multi_reduction <add>, %50, %cst_34 [1] : vector<2x32xf32> to vector<2xf32>
    %52 = vector.shape_cast %51 : vector<2xf32> to vector<2x1xf32>
    %cst_35 = arith.constant dense<0.000000e+00> : vector<1xf32>
    %53 = vector.multi_reduction <add>, %52, %cst_35 [0] : vector<2x1xf32> to vector<1xf32>
    %54 = vector.shape_cast %53 : vector<1xf32> to vector<1x1xf32>
    %cst_36 = arith.constant 2.000000e+00 : f32
    %55 = vector.broadcast %cst_36 : f32 to vector<1x1xf32>
    %56 = arith.divf %54, %55 : vector<1x1xf32>
    %cst_37 = arith.constant -2.500000e-02 : f32
    %57 = vector.broadcast %cst_37 : f32 to vector<1x1xf32>
    %58 = arith.mulf %57, %56 : vector<1x1xf32>
    %c0_38 = arith.constant 0 : index
    %c0_39 = arith.constant 0 : index
    %59 = vector.load %arg23[%c0_38, %c0_39] : memref<1x1xf32, #tpu.memory_space<vmem>>, vector<1x1xf32>
    tpu.vector_store %arg23[%c0_38, %c0_39], %58 {strides = array<i32>} : memref<1x1xf32, #tpu.memory_space<vmem>>, vector<1x1xf32>,
    %c0_40 = arith.constant 0 : index
    %c0_41 = arith.constant 0 : index
    %60 = vector.load %arg15[%c0_40, %c0_41] : memref<16x32xf32, #tpu.memory_space<vmem>>, vector<16x32xf32>
    %cst_42 = arith.constant 5.000000e-01 : f32
    %61 = vector.broadcast %cst_42 : f32 to vector<16x32xf32>
    %62 = arith.mulf %61, %10 : vector<16x32xf32>
    %63 = math.exp %62 : vector<16x32xf32>
    %64 = arith.mulf %60, %63 : vector<16x32xf32>
    %65 = arith.addf %5, %64 : vector<16x32xf32>
    %c0_43 = arith.constant 0 : index
    %c0_44 = arith.constant 0 : index
    %66 = vector.load %arg16[%c0_43, %c0_44] : memref<16x32xf32, #tpu.memory_space<vmem>>, vector<16x32xf32>
    %cst_45 = arith.constant 5.000000e-01 : f32
    %67 = vector.broadcast %cst_45 : f32 to vector<16x32xf32>
    %68 = arith.mulf %67, %20 : vector<16x32xf32>
    %69 = math.exp %68 : vector<16x32xf32>
    %70 = arith.mulf %66, %69 : vector<16x32xf32>
    %71 = arith.addf %15, %70 : vector<16x32xf32>
    %c0_46 = arith.constant 0 : index
    %c0_47 = arith.constant 0 : index
    %72 = vector.load %arg17[%c0_46, %c0_47] : memref<2x32xf32, #tpu.memory_space<vmem>>, vector<2x32xf32>
    %cst_48 = arith.constant 5.000000e-01 : f32
    %73 = vector.broadcast %cst_48 : f32 to vector<2x32xf32>
    %74 = arith.mulf %73, %23 : vector<2x32xf32>
    %75 = math.exp %74 : vector<2x32xf32>
    %76 = arith.mulf %72, %75 : vector<2x32xf32>
    %77 = arith.addf %22, %76 : vector<2x32xf32>
    %c0_49 = arith.constant 0 : index
    %c0_50 = arith.constant 0 : index
    %78 = vector.load %arg3[%c0_49, %c0_50] : memref<16x2xf32, #tpu.memory_space<vmem>>, vector<16x2xf32>
    %cst_51 = arith.constant dense<0.000000e+00> : vector<16x32xf32>
    %79 = tpu.matmul %78, %77, %cst_51 {dimension_numbers = #tpu.dot_dimension_numbers<[1], [0], [0], [1], [0, 0, 1, 1], [], []>} : vector<16x2xf32>, vector<2x32xf32>, vector<16x32xf32> -> vector<16x32xf32>
    %c0_52 = arith.constant 0 : index
    %c0_53 = arith.constant 0 : index
    %80 = vector.load %arg12[%c0_52, %c0_53] : memref<32x32xf32, #tpu.memory_space<vmem>>, vector<32x32xf32>
    %cst_54 = arith.constant dense<0.000000e+00> : vector<16x32xf32>
    %81 = tpu.matmul %79, %80, %cst_54 {dimension_numbers = #tpu.dot_dimension_numbers<[1], [0], [0], [1], [0, 0, 1, 1], [], []>} : vector<16x32xf32>, vector<32x32xf32>, vector<16x32xf32> -> vector<16x32xf32>
    %c0_55 = arith.constant 0 : index
    %c0_56 = arith.constant 0 : index
    %82 = vector.load %arg13[%c0_55, %c0_56] : memref<32x32xf32, #tpu.memory_space<vmem>>, vector<32x32xf32>
    %cst_57 = arith.constant dense<0.000000e+00> : vector<16x32xf32>
    %83 = tpu.matmul %65, %82, %cst_57 {dimension_numbers = #tpu.dot_dimension_numbers<[1], [0], [0], [1], [0, 0, 1, 1], [], []>} : vector<16x32xf32>, vector<32x32xf32>, vector<16x32xf32> -> vector<16x32xf32>
    %84 = arith.addf %81, %83 : vector<16x32xf32>
    %c0_58 = arith.constant 0 : index
    %c0_59 = arith.constant 0 : index
    %85 = vector.load %arg14[%c0_58, %c0_59] : memref<1x32xf32, #tpu.memory_space<vmem>>, vector<1x32xf32>
    %86 = vector.broadcast %85 : vector<1x32xf32> to vector<16x32xf32>
    %87 = arith.addf %84, %86 : vector<16x32xf32>
    %cst_60 = arith.constant 0.000000e+00 : f32
    %88 = vector.broadcast %cst_60 : f32 to vector<16x32xf32>
    %89 = arith.maximumf %87, %88 : vector<16x32xf32>
    %c0_61 = arith.constant 0 : index
    %c0_62 = arith.constant 0 : index
    %90 = vector.load %arg18[%c0_61, %c0_62] : memref<16x32xf32, #tpu.memory_space<vmem>>, vector<16x32xf32>
    tpu.vector_store %arg18[%c0_61, %c0_62], %89 {strides = array<i32>} : memref<16x32xf32, #tpu.memory_space<vmem>>, vector<16x32xf32>,
    %c0_63 = arith.constant 0 : index
    %c0_64 = arith.constant 0 : index
    %91 = vector.load %arg19[%c0_63, %c0_64] : memref<16x32xf32, #tpu.memory_space<vmem>>, vector<16x32xf32>
    tpu.vector_store %arg19[%c0_63, %c0_64], %71 {strides = array<i32>} : memref<16x32xf32, #tpu.memory_space<vmem>>, vector<16x32xf32>,
    %c0_65 = arith.constant 0 : index
    %c0_66 = arith.constant 0 : index
    %92 = vector.load %arg20[%c0_65, %c0_66] : memref<16x32xf32, #tpu.memory_space<vmem>>, vector<16x32xf32>
    tpu.vector_store %arg20[%c0_65, %c0_66], %65 {strides = array<i32>} : memref<16x32xf32, #tpu.memory_space<vmem>>, vector<16x32xf32>,
    %c0_67 = arith.constant 0 : index
    %c0_68 = arith.constant 0 : index
    %93 = vector.load %arg21[%c0_67, %c0_68] : memref<2x32xf32, #tpu.memory_space<vmem>>, vector<2x32xf32>
    tpu.vector_store %arg21[%c0_67, %c0_68], %77 {strides = array<i32>} : memref<2x32xf32, #tpu.memory_space<vmem>>, vector<2x32xf32>,
    return
  }
  func.func @transform_0(%arg0: i32) -> (i32, i32) {
    %c0_i32 = arith.constant 0 : i32
    %c0_i32_0 = arith.constant 0 : i32
    %c0_i32_1 = arith.constant 0 : i32
    return %c0_i32, %c0_i32_0 : i32, i32
  }
  func.func @transform_1(%arg0: i32) -> (i32, i32) {
    %c0_i32 = arith.constant 0 : i32
    %c0_i32_0 = arith.constant 0 : i32
    %c0_i32_1 = arith.constant 0 : i32
    return %c0_i32, %c0_i32_0 : i32, i32
  }
  func.func @transform_2(%arg0: i32) -> (i32, i32) {
    %c0_i32 = arith.constant 0 : i32
    %c0_i32_0 = arith.constant 0 : i32
    %c0_i32_1 = arith.constant 0 : i32
    return %c0_i32, %c0_i32_0 : i32, i32
  }
  func.func @transform_3(%arg0: i32) -> (i32, i32) {
    %c0_i32 = arith.constant 0 : i32
    %c0_i32_0 = arith.constant 0 : i32
    %c0_i32_1 = arith.constant 0 : i32
    return %c0_i32, %c0_i32_0 : i32, i32
  }
  func.func @transform_4(%arg0: i32) -> (i32, i32) {
    %c0_i32 = arith.constant 0 : i32
    %c0_i32_0 = arith.constant 0 : i32
    %c0_i32_1 = arith.constant 0 : i32
    return %c0_i32, %c0_i32_0 : i32, i32
  }
  func.func @transform_5(%arg0: i32) -> (i32, i32) {
    %c0_i32 = arith.constant 0 : i32
    %c0_i32_0 = arith.constant 0 : i32
    %c0_i32_1 = arith.constant 0 : i32
    return %c0_i32, %c0_i32_0 : i32, i32
  }
  func.func @transform_6(%arg0: i32) -> (i32, i32) {
    %c0_i32 = arith.constant 0 : i32
    %c0_i32_0 = arith.constant 0 : i32
    %c0_i32_1 = arith.constant 0 : i32
    return %c0_i32, %c0_i32_0 : i32, i32
  }
  func.func @transform_7(%arg0: i32) -> (i32, i32) {
    %c0_i32 = arith.constant 0 : i32
    %c0_i32_0 = arith.constant 0 : i32
    %c0_i32_1 = arith.constant 0 : i32
    return %c0_i32, %c0_i32_0 : i32, i32
  }
  func.func @transform_8(%arg0: i32) -> (i32, i32) {
    %c0_i32 = arith.constant 0 : i32
    %c0_i32_0 = arith.constant 0 : i32
    %c0_i32_1 = arith.constant 0 : i32
    return %c0_i32, %c0_i32_0 : i32, i32
  }
  func.func @transform_9(%arg0: i32) -> (i32, i32) {
    %c0_i32 = arith.constant 0 : i32
    %c0_i32_0 = arith.constant 0 : i32
    %c0_i32_1 = arith.constant 0 : i32
    return %c0_i32, %c0_i32_0 : i32, i32
  }
  func.func @transform_10(%arg0: i32) -> (i32, i32) {
    %c0_i32 = arith.constant 0 : i32
    %c0_i32_0 = arith.constant 0 : i32
    %c0_i32_1 = arith.constant 0 : i32
    return %c0_i32, %c0_i32_0 : i32, i32
  }
  func.func @transform_11(%arg0: i32) -> (i32, i32) {
    %c0_i32 = arith.constant 0 : i32
    %c0_i32_0 = arith.constant 0 : i32
    %c0_i32_1 = arith.constant 0 : i32
    return %c0_i32, %c0_i32_0 : i32, i32
  }
  func.func @transform_12(%arg0: i32) -> (i32, i32) {
    %c0_i32 = arith.constant 0 : i32
    %c0_i32_0 = arith.constant 0 : i32
    %c0_i32_1 = arith.constant 0 : i32
    return %c0_i32, %c0_i32_0 : i32, i32
  }
  func.func @transform_13(%arg0: i32) -> (i32, i32) {
    %c0_i32 = arith.constant 0 : i32
    %c0_i32_0 = arith.constant 0 : i32
    %c0_i32_1 = arith.constant 0 : i32
    return %c0_i32, %c0_i32_0 : i32, i32
  }
  func.func @transform_14(%arg0: i32) -> (i32, i32) {
    %c0_i32 = arith.constant 0 : i32
    %c0_i32_0 = arith.constant 0 : i32
    %c0_i32_1 = arith.constant 0 : i32
    return %c0_i32, %c0_i32_0 : i32, i32
  }
  func.func @transform_15(%arg0: i32) -> (i32, i32) {
    %c0_i32 = arith.constant 0 : i32
    %c0_i32_0 = arith.constant 0 : i32
    %c0_i32_1 = arith.constant 0 : i32
    return %c0_i32, %c0_i32_0 : i32, i32
  }
  func.func @transform_16(%arg0: i32) -> (i32, i32) {
    %c0_i32 = arith.constant 0 : i32
    %c0_i32_0 = arith.constant 0 : i32
    %c0_i32_1 = arith.constant 0 : i32
    return %c0_i32, %c0_i32_0 : i32, i32
  }
  func.func @transform_17(%arg0: i32) -> (i32, i32) {
    %c0_i32 = arith.constant 0 : i32
    %c0_i32_0 = arith.constant 0 : i32
    %c0_i32_1 = arith.constant 0 : i32
    return %c0_i32, %c0_i32_0 : i32, i32
  }
  func.func @transform_18(%arg0: i32) -> (i32, i32) {
    %c0_i32 = arith.constant 0 : i32
    %c0_i32_0 = arith.constant 0 : i32
    %c0_i32_1 = arith.constant 0 : i32
    return %c0_i32, %c0_i32_0 : i32, i32
  }
  func.func @transform_19(%arg0: i32) -> (i32, i32) {
    %c0_i32 = arith.constant 0 : i32
    %c0_i32_0 = arith.constant 0 : i32
    %c0_i32_1 = arith.constant 0 : i32
    return %c0_i32, %c0_i32_0 : i32, i32
  }
  func.func @transform_20(%arg0: i32) -> (i32, i32) {
    %c0_i32 = arith.constant 0 : i32
    %c0_i32_0 = arith.constant 0 : i32
    %c0_i32_1 = arith.constant 0 : i32
    return %c0_i32, %c0_i32_0 : i32, i32
  }
  func.func @transform_21(%arg0: i32) -> (i32, i32) {
    %c0_i32 = arith.constant 0 : i32
    %c0_i32_0 = arith.constant 0 : i32
    %c0_i32_1 = arith.constant 0 : i32
    return %c0_i32, %c0_i32_0 : i32, i32
  }
  func.func @transform_22(%arg0: i32) -> (i32, i32) {
    %c0_i32 = arith.constant 0 : i32
    %c0_i32_0 = arith.constant 0 : i32
    %c0_i32_1 = arith.constant 0 : i32
    return %c0_i32, %c0_i32_0 : i32, i32
  }
}

module attributes {stable_mosaic.version = 11 : i64} {
  func.func @_edge_bce_pair_kernel(%arg0: i32, %arg1: memref<32x32xf32, #tpu.memory_space<vmem>>, %arg2: memref<32x32xf32, #tpu.memory_space<vmem>>, %arg3: memref<48x32xf32, #tpu.memory_space<vmem>>, %arg4: memref<48x32xf32, #tpu.memory_space<vmem>>, %arg5: memref<32x32xf32, #tpu.memory_space<vmem>>, %arg6: memref<32x32xf32, #tpu.memory_space<vmem>>, %arg7: memref<48x32xf32, #tpu.memory_space<vmem>>, %arg8: memref<48x32xf32, #tpu.memory_space<vmem>>, %arg9: memref<1x1xf32, #tpu.memory_space<vmem>>, %arg10: memref<1x1xf32, #tpu.memory_space<vmem>>) attributes {dimension_semantics = [#tpu.dimension_semantics<arbitrary>], iteration_bounds = array<i64: 1>, scalar_prefetch = 0 : i64, scratch_operands = 0 : i64, tpu.core_type = #tpu.core_type<tc>, window_params = [{pipeline_mode = #tpu.pipeline_mode<synchronous>, transform_indices = @transform_0, window_bounds = array<i64: 32, 32>}, {pipeline_mode = #tpu.pipeline_mode<synchronous>, transform_indices = @transform_1, window_bounds = array<i64: 32, 32>}, {pipeline_mode = #tpu.pipeline_mode<synchronous>, transform_indices = @transform_2, window_bounds = array<i64: 48, 32>}, {pipeline_mode = #tpu.pipeline_mode<synchronous>, transform_indices = @transform_3, window_bounds = array<i64: 48, 32>}, {pipeline_mode = #tpu.pipeline_mode<synchronous>, transform_indices = @transform_4, window_bounds = array<i64: 32, 32>}, {pipeline_mode = #tpu.pipeline_mode<synchronous>, transform_indices = @transform_5, window_bounds = array<i64: 32, 32>}, {pipeline_mode = #tpu.pipeline_mode<synchronous>, transform_indices = @transform_6, window_bounds = array<i64: 48, 32>}, {pipeline_mode = #tpu.pipeline_mode<synchronous>, transform_indices = @transform_7, window_bounds = array<i64: 48, 32>}, {pipeline_mode = #tpu.pipeline_mode<synchronous>, transform_indices = @transform_8, window_bounds = array<i64: 1, 1>}, {pipeline_mode = #tpu.pipeline_mode<synchronous>, transform_indices = @transform_9, window_bounds = array<i64: 1, 1>}]} {
    %c0 = arith.constant 0 : index
    %c0_0 = arith.constant 0 : index
    %0 = vector.load %arg1[%c0, %c0_0] : memref<32x32xf32, #tpu.memory_space<vmem>>, vector<32x32xf32>
    %c0_1 = arith.constant 0 : index
    %c0_2 = arith.constant 0 : index
    %1 = vector.load %arg2[%c0_1, %c0_2] : memref<32x32xf32, #tpu.memory_space<vmem>>, vector<32x32xf32>
    %2 = arith.mulf %0, %1 : vector<32x32xf32>
    %cst = arith.constant dense<0.000000e+00> : vector<32xf32>
    %3 = vector.multi_reduction <add>, %2, %cst [1] : vector<32x32xf32> to vector<32xf32>
    %4 = vector.shape_cast %3 : vector<32xf32> to vector<32x1xf32>
    %cst_3 = arith.constant -1.000000e+00 : f32
    %5 = vector.broadcast %cst_3 : f32 to vector<32x1xf32>
    %6 = arith.mulf %5, %4 : vector<32x1xf32>
    %cst_4 = arith.constant 0.000000e+00 : f32
    %7 = vector.broadcast %cst_4 : f32 to vector<32x1xf32>
    %8 = arith.maximumf %6, %7 : vector<32x1xf32>
    %9 = math.absf %4 : vector<32x1xf32>
    %cst_5 = arith.constant 0.000000e+00 : f32
    %10 = vector.broadcast %cst_5 : f32 to vector<32x1xf32>
    %11 = arith.subf %10, %9 : vector<32x1xf32>
    %12 = math.exp %11 : vector<32x1xf32>
    %cst_6 = arith.constant 1.000000e+00 : f32
    %13 = vector.broadcast %cst_6 : f32 to vector<32x1xf32>
    %14 = arith.addf %13, %12 : vector<32x1xf32>
    %15 = math.log %14 : vector<32x1xf32>
    %16 = arith.addf %8, %15 : vector<32x1xf32>
    %cst_7 = arith.constant dense<0.000000e+00> : vector<1xf32>
    %17 = vector.multi_reduction <add>, %16, %cst_7 [0] : vector<32x1xf32> to vector<1xf32>
    %18 = vector.shape_cast %17 : vector<1xf32> to vector<1x1xf32>
    %cst_8 = arith.constant 3.200000e+01 : f32
    %19 = vector.broadcast %cst_8 : f32 to vector<1x1xf32>
    %20 = arith.divf %18, %19 : vector<1x1xf32>
    %c0_9 = arith.constant 0 : index
    %c0_10 = arith.constant 0 : index
    %21 = vector.load %arg3[%c0_9, %c0_10] : memref<48x32xf32, #tpu.memory_space<vmem>>, vector<48x32xf32>
    %c0_11 = arith.constant 0 : index
    %c0_12 = arith.constant 0 : index
    %22 = vector.load %arg4[%c0_11, %c0_12] : memref<48x32xf32, #tpu.memory_space<vmem>>, vector<48x32xf32>
    %23 = arith.mulf %21, %22 : vector<48x32xf32>
    %cst_13 = arith.constant dense<0.000000e+00> : vector<48xf32>
    %24 = vector.multi_reduction <add>, %23, %cst_13 [1] : vector<48x32xf32> to vector<48xf32>
    %25 = vector.shape_cast %24 : vector<48xf32> to vector<48x1xf32>
    %cst_14 = arith.constant 1.000000e+00 : f32
    %26 = vector.broadcast %cst_14 : f32 to vector<48x1xf32>
    %27 = arith.mulf %26, %25 : vector<48x1xf32>
    %cst_15 = arith.constant 0.000000e+00 : f32
    %28 = vector.broadcast %cst_15 : f32 to vector<48x1xf32>
    %29 = arith.maximumf %27, %28 : vector<48x1xf32>
    %30 = math.absf %25 : vector<48x1xf32>
    %cst_16 = arith.constant 0.000000e+00 : f32
    %31 = vector.broadcast %cst_16 : f32 to vector<48x1xf32>
    %32 = arith.subf %31, %30 : vector<48x1xf32>
    %33 = math.exp %32 : vector<48x1xf32>
    %cst_17 = arith.constant 1.000000e+00 : f32
    %34 = vector.broadcast %cst_17 : f32 to vector<48x1xf32>
    %35 = arith.addf %34, %33 : vector<48x1xf32>
    %36 = math.log %35 : vector<48x1xf32>
    %37 = arith.addf %29, %36 : vector<48x1xf32>
    %cst_18 = arith.constant dense<0.000000e+00> : vector<1xf32>
    %38 = vector.multi_reduction <add>, %37, %cst_18 [0] : vector<48x1xf32> to vector<1xf32>
    %39 = vector.shape_cast %38 : vector<1xf32> to vector<1x1xf32>
    %cst_19 = arith.constant 4.800000e+01 : f32
    %40 = vector.broadcast %cst_19 : f32 to vector<1x1xf32>
    %41 = arith.divf %39, %40 : vector<1x1xf32>
    %42 = arith.addf %20, %41 : vector<1x1xf32>
    %c0_20 = arith.constant 0 : index
    %c0_21 = arith.constant 0 : index
    %43 = vector.load %arg9[%c0_20, %c0_21] : memref<1x1xf32, #tpu.memory_space<vmem>>, vector<1x1xf32>
    tpu.vector_store %arg9[%c0_20, %c0_21], %42 {strides = array<i32>} : memref<1x1xf32, #tpu.memory_space<vmem>>, vector<1x1xf32>,
    %c0_22 = arith.constant 0 : index
    %c0_23 = arith.constant 0 : index
    %44 = vector.load %arg5[%c0_22, %c0_23] : memref<32x32xf32, #tpu.memory_space<vmem>>, vector<32x32xf32>
    %c0_24 = arith.constant 0 : index
    %c0_25 = arith.constant 0 : index
    %45 = vector.load %arg6[%c0_24, %c0_25] : memref<32x32xf32, #tpu.memory_space<vmem>>, vector<32x32xf32>
    %46 = arith.mulf %44, %45 : vector<32x32xf32>
    %cst_26 = arith.constant dense<0.000000e+00> : vector<32xf32>
    %47 = vector.multi_reduction <add>, %46, %cst_26 [1] : vector<32x32xf32> to vector<32xf32>
    %48 = vector.shape_cast %47 : vector<32xf32> to vector<32x1xf32>
    %cst_27 = arith.constant -1.000000e+00 : f32
    %49 = vector.broadcast %cst_27 : f32 to vector<32x1xf32>
    %50 = arith.mulf %49, %48 : vector<32x1xf32>
    %cst_28 = arith.constant 0.000000e+00 : f32
    %51 = vector.broadcast %cst_28 : f32 to vector<32x1xf32>
    %52 = arith.maximumf %50, %51 : vector<32x1xf32>
    %53 = math.absf %48 : vector<32x1xf32>
    %cst_29 = arith.constant 0.000000e+00 : f32
    %54 = vector.broadcast %cst_29 : f32 to vector<32x1xf32>
    %55 = arith.subf %54, %53 : vector<32x1xf32>
    %56 = math.exp %55 : vector<32x1xf32>
    %cst_30 = arith.constant 1.000000e+00 : f32
    %57 = vector.broadcast %cst_30 : f32 to vector<32x1xf32>
    %58 = arith.addf %57, %56 : vector<32x1xf32>
    %59 = math.log %58 : vector<32x1xf32>
    %60 = arith.addf %52, %59 : vector<32x1xf32>
    %cst_31 = arith.constant dense<0.000000e+00> : vector<1xf32>
    %61 = vector.multi_reduction <add>, %60, %cst_31 [0] : vector<32x1xf32> to vector<1xf32>
    %62 = vector.shape_cast %61 : vector<1xf32> to vector<1x1xf32>
    %cst_32 = arith.constant 3.200000e+01 : f32
    %63 = vector.broadcast %cst_32 : f32 to vector<1x1xf32>
    %64 = arith.divf %62, %63 : vector<1x1xf32>
    %c0_33 = arith.constant 0 : index
    %c0_34 = arith.constant 0 : index
    %65 = vector.load %arg7[%c0_33, %c0_34] : memref<48x32xf32, #tpu.memory_space<vmem>>, vector<48x32xf32>
    %c0_35 = arith.constant 0 : index
    %c0_36 = arith.constant 0 : index
    %66 = vector.load %arg8[%c0_35, %c0_36] : memref<48x32xf32, #tpu.memory_space<vmem>>, vector<48x32xf32>
    %67 = arith.mulf %65, %66 : vector<48x32xf32>
    %cst_37 = arith.constant dense<0.000000e+00> : vector<48xf32>
    %68 = vector.multi_reduction <add>, %67, %cst_37 [1] : vector<48x32xf32> to vector<48xf32>
    %69 = vector.shape_cast %68 : vector<48xf32> to vector<48x1xf32>
    %cst_38 = arith.constant 1.000000e+00 : f32
    %70 = vector.broadcast %cst_38 : f32 to vector<48x1xf32>
    %71 = arith.mulf %70, %69 : vector<48x1xf32>
    %cst_39 = arith.constant 0.000000e+00 : f32
    %72 = vector.broadcast %cst_39 : f32 to vector<48x1xf32>
    %73 = arith.maximumf %71, %72 : vector<48x1xf32>
    %74 = math.absf %69 : vector<48x1xf32>
    %cst_40 = arith.constant 0.000000e+00 : f32
    %75 = vector.broadcast %cst_40 : f32 to vector<48x1xf32>
    %76 = arith.subf %75, %74 : vector<48x1xf32>
    %77 = math.exp %76 : vector<48x1xf32>
    %cst_41 = arith.constant 1.000000e+00 : f32
    %78 = vector.broadcast %cst_41 : f32 to vector<48x1xf32>
    %79 = arith.addf %78, %77 : vector<48x1xf32>
    %80 = math.log %79 : vector<48x1xf32>
    %81 = arith.addf %73, %80 : vector<48x1xf32>
    %cst_42 = arith.constant dense<0.000000e+00> : vector<1xf32>
    %82 = vector.multi_reduction <add>, %81, %cst_42 [0] : vector<48x1xf32> to vector<1xf32>
    %83 = vector.shape_cast %82 : vector<1xf32> to vector<1x1xf32>
    %cst_43 = arith.constant 4.800000e+01 : f32
    %84 = vector.broadcast %cst_43 : f32 to vector<1x1xf32>
    %85 = arith.divf %83, %84 : vector<1x1xf32>
    %86 = arith.addf %64, %85 : vector<1x1xf32>
    %c0_44 = arith.constant 0 : index
    %c0_45 = arith.constant 0 : index
    %87 = vector.load %arg10[%c0_44, %c0_45] : memref<1x1xf32, #tpu.memory_space<vmem>>, vector<1x1xf32>
    tpu.vector_store %arg10[%c0_44, %c0_45], %86 {strides = array<i32>} : memref<1x1xf32, #tpu.memory_space<vmem>>, vector<1x1xf32>,
    return
  }
  func.func @transform_0(%arg0: i32) -> (i32, i32) {
    %c0_i32 = arith.constant 0 : i32
    %c0_i32_0 = arith.constant 0 : i32
    %c0_i32_1 = arith.constant 0 : i32
    return %c0_i32, %c0_i32_0 : i32, i32
  }
  func.func @transform_1(%arg0: i32) -> (i32, i32) {
    %c0_i32 = arith.constant 0 : i32
    %c0_i32_0 = arith.constant 0 : i32
    %c0_i32_1 = arith.constant 0 : i32
    return %c0_i32, %c0_i32_0 : i32, i32
  }
  func.func @transform_2(%arg0: i32) -> (i32, i32) {
    %c0_i32 = arith.constant 0 : i32
    %c0_i32_0 = arith.constant 0 : i32
    %c0_i32_1 = arith.constant 0 : i32
    return %c0_i32, %c0_i32_0 : i32, i32
  }
  func.func @transform_3(%arg0: i32) -> (i32, i32) {
    %c0_i32 = arith.constant 0 : i32
    %c0_i32_0 = arith.constant 0 : i32
    %c0_i32_1 = arith.constant 0 : i32
    return %c0_i32, %c0_i32_0 : i32, i32
  }
  func.func @transform_4(%arg0: i32) -> (i32, i32) {
    %c0_i32 = arith.constant 0 : i32
    %c0_i32_0 = arith.constant 0 : i32
    %c0_i32_1 = arith.constant 0 : i32
    return %c0_i32, %c0_i32_0 : i32, i32
  }
  func.func @transform_5(%arg0: i32) -> (i32, i32) {
    %c0_i32 = arith.constant 0 : i32
    %c0_i32_0 = arith.constant 0 : i32
    %c0_i32_1 = arith.constant 0 : i32
    return %c0_i32, %c0_i32_0 : i32, i32
  }
  func.func @transform_6(%arg0: i32) -> (i32, i32) {
    %c0_i32 = arith.constant 0 : i32
    %c0_i32_0 = arith.constant 0 : i32
    %c0_i32_1 = arith.constant 0 : i32
    return %c0_i32, %c0_i32_0 : i32, i32
  }
  func.func @transform_7(%arg0: i32) -> (i32, i32) {
    %c0_i32 = arith.constant 0 : i32
    %c0_i32_0 = arith.constant 0 : i32
    %c0_i32_1 = arith.constant 0 : i32
    return %c0_i32, %c0_i32_0 : i32, i32
  }
  func.func @transform_8(%arg0: i32) -> (i32, i32) {
    %c0_i32 = arith.constant 0 : i32
    %c0_i32_0 = arith.constant 0 : i32
    %c0_i32_1 = arith.constant 0 : i32
    return %c0_i32, %c0_i32_0 : i32, i32
  }
  func.func @transform_9(%arg0: i32) -> (i32, i32) {
    %c0_i32 = arith.constant 0 : i32
    %c0_i32_0 = arith.constant 0 : i32
    %c0_i32_1 = arith.constant 0 : i32
    return %c0_i32, %c0_i32_0 : i32, i32
  }
}

</mosaic_0001>

<llo_original>
// kernel: deep_gcfx_forward.4
$region0: #{deep_gcfx_forward.4}
  #allocation0 [shape = 'u32[]', space=smem, size = 0x4, offset = 0x4, fixed_abs, tag = 'smem constant byte address 0x4 - core index']
  #allocation1 [shape = 'u32[144,128]{1,0:T(1,128)}', space=vmem, size = 0x12000, scoped, tag = 'internal scratch']
  %s0 = inlined_call_operand.vmem [shape: f32[16,8], index: 0, kind: input, shape index: {}]
  %s1 = inlined_call_operand.vmem [shape: f32[2,16], index: 1, kind: input, shape index: {}]
  %s2 = inlined_call_operand.vmem [shape: f32[16,2], index: 2, kind: input, shape index: {}]
  %s3 = inlined_call_operand.vmem [shape: f32[8,32], index: 3, kind: input, shape index: {}]
  %s4 = inlined_call_operand.vmem [shape: f32[1,32], index: 4, kind: input, shape index: {}]
  %s5 = inlined_call_operand.vmem [shape: f32[8,32], index: 5, kind: input, shape index: {}]
  %s6 = inlined_call_operand.vmem [shape: f32[1,32], index: 6, kind: input, shape index: {}]
  %s7 = inlined_call_operand.vmem [shape: f32[8,32], index: 7, kind: input, shape index: {}]
  %s8 = inlined_call_operand.vmem [shape: f32[1,32], index: 8, kind: input, shape index: {}]
  %s9 = inlined_call_operand.vmem [shape: f32[8,32], index: 9, kind: input, shape index: {}]
  %s10 = inlined_call_operand.vmem [shape: f32[1,32], index: 10, kind: input, shape index: {}]
  %s11 = inlined_call_operand.vmem [shape: f32[32,32], index: 11, kind: input, shape index: {}]
  %s12 = inlined_call_operand.vmem [shape: f32[32,32], index: 12, kind: input, shape index: {}]
  %s13 = inlined_call_operand.vmem [shape: f32[1,32], index: 13, kind: input, shape index: {}]
  %s14 = inlined_call_operand.vmem [shape: f32[16,32], index: 14, kind: input, shape index: {}]
  %s15 = inlined_call_operand.vmem [shape: f32[16,32], index: 15, kind: input, shape index: {}]
  %s16 = inlined_call_operand.vmem [shape: f32[2,32], index: 16, kind: input, shape index: {}]
  %s17 = inlined_call_operand.vmem [shape: f32[16,32], index: 17, kind: output, shape index: {0}]
  %s18 = inlined_call_operand.vmem [shape: f32[16,32], index: 18, kind: output, shape index: {1}]
  %s19 = inlined_call_operand.hbm [shape: f32[16,32], index: 19, kind: output, shape index: {2}]
  %s20 = inlined_call_operand.hbm [shape: f32[2,32], index: 20, kind: output, shape index: {3}]
  %s21 = inlined_call_operand.hbm [shape: f32[1,1], index: 21, kind: output, shape index: {4}]
  %s22 = inlined_call_operand.hbm [shape: f32[1,1], index: 22, kind: output, shape index: {5}]
  %23 = xla_tuple %s17, %s18, %s19, %s20, %s21, %s22
  %s24 = sld [smem:[#allocation0]]
  $region118: #{deep_gcfx_forward.4} parent=0
    _
  %s26 = ssub.s32 1, %s24
  %s27 = scalar_select 0, %s26, %s24
  $region1: #{deep_gcfx_forward.4} parent=0
    #allocation2 [shape = 'u8[8192]{0}', space=vmem, size = 0x2000, scoped, tag = 'output window, operand 2, single buffered']
    #allocation3 [shape = 's32[1]{0}', space=sflag, size = 0x4, scoped, tag = 'scoped memory for deep_gcfx_forward.4']
    #allocation4 [shape = 'u8[1024]{0}', space=vmem, size = 0x400, scoped, tag = 'output window, operand 3, single buffered']
    #allocation5 [shape = 's32[1]{0}', space=sflag, size = 0x4, scoped, tag = 'scoped memory for deep_gcfx_forward.4']
    #allocation6 [shape = 'u8[512]{0}', space=vmem, size = 0x400, scoped, tag = 'output window, operand 4, single buffered']
    #allocation7 [shape = 'u8[512]{0}', space=vmem, size = 0x400, scoped, tag = 'output window, operand 5, single buffered']
    #allocation8 [shape = 's32[1]{0}', space=sflag, size = 0x4, scoped, tag = 'scoped memory for deep_gcfx_forward.4']
    %28 = vsyncpa [#allocation3], 0
    %29 = vsyncpa [#allocation5], 0
    %30 = vsyncpa [#allocation8], 0
    // Predicated region
    $region2: #{deep_gcfx_forward.4} parent=1 // pred_check
      _
    $region3: #{deep_gcfx_forward.4} parent=1 // pred_check_branch
      %32 = sbr.rel (0) target = $region5
    $region4: #{deep_gcfx_forward.4} parent=1 // pred_region
      _
    $region5: #{deep_gcfx_forward.4} parent=1 // pred_fallthru
      _
    // Predicated region
    $region6: #{deep_gcfx_forward.4} parent=1 // pred_check
      _
    $region7: #{deep_gcfx_forward.4} parent=1 // pred_check_branch
      %34 = sbr.rel (0) target = $region9
    $region8: #{deep_gcfx_forward.4} parent=1 // pred_region
      _
    $region9: #{deep_gcfx_forward.4} parent=1 // pred_fallthru
      _
    // Predicated region
    $region10: #{deep_gcfx_forward.4} parent=1 // pred_check
      _
    $region11: #{deep_gcfx_forward.4} parent=1 // pred_check_branch
      %36 = sbr.rel (0) target = $region13
    $region12: #{deep_gcfx_forward.4} parent=1 // pred_region
      _
    $region13: #{deep_gcfx_forward.4} parent=1 // pred_fallthru
      _
    // Predicated region
    $region14: #{deep_gcfx_forward.4} parent=1 // pred_check
      _
    $region15: #{deep_gcfx_forward.4} parent=1 // pred_check_branch
      %38 = sbr.rel (0) target = $region17
    $region16: #{deep_gcfx_forward.4} parent=1 // pred_region
      _
    $region17: #{deep_gcfx_forward.4} parent=1 // pred_fallthru
      _
    // Predicated region
    $region18: #{deep_gcfx_forward.4} parent=1 // pred_check
      _
    $region19: #{deep_gcfx_forward.4} parent=1 // pred_check_branch
      %40 = sbr.rel (0) target = $region21
    $region20: #{deep_gcfx_forward.4} parent=1 // pred_region
      _
    $region21: #{deep_gcfx_forward.4} parent=1 // pred_fallthru
      _
    // Predicated region
    $region22: #{deep_gcfx_forward.4} parent=1 // pred_check
      _
    $region23: #{deep_gcfx_forward.4} parent=1 // pred_check_branch
      %42 = sbr.rel (0) target = $region25
    $region24: #{deep_gcfx_forward.4} parent=1 // pred_region
      _
    $region25: #{deep_gcfx_forward.4} parent=1 // pred_fallthru
      _
    // Predicated region
    $region26: #{deep_gcfx_forward.4} parent=1 // pred_check
      _
    $region27: #{deep_gcfx_forward.4} parent=1 // pred_check_branch
      %44 = sbr.rel (0) target = $region29
    $region28: #{deep_gcfx_forward.4} parent=1 // pred_region
      _
    $region29: #{deep_gcfx_forward.4} parent=1 // pred_fallthru
      _
    // Predicated region
    $region30: #{deep_gcfx_forward.4} parent=1 // pred_check
      _
    $region31: #{deep_gcfx_forward.4} parent=1 // pred_check_branch
      %46 = sbr.rel (0) target = $region33
    $region32: #{deep_gcfx_forward.4} parent=1 // pred_region
      _
    $region33: #{deep_gcfx_forward.4} parent=1 // pred_fallthru
      _
    // Predicated region
    $region34: #{deep_gcfx_forward.4} parent=1 // pred_check
      _
    $region35: #{deep_gcfx_forward.4} parent=1 // pred_check_branch
      %48 = sbr.rel (0) target = $region37
    $region36: #{deep_gcfx_forward.4} parent=1 // pred_region
      _
    $region37: #{deep_gcfx_forward.4} parent=1 // pred_fallthru
      _
    // Predicated region
    $region38: #{deep_gcfx_forward.4} parent=1 // pred_check
      _
    $region39: #{deep_gcfx_forward.4} parent=1 // pred_check_branch
      %50 = sbr.rel (0) target = $region41
    $region40: #{deep_gcfx_forward.4} parent=1 // pred_region
      _
    $region41: #{deep_gcfx_forward.4} parent=1 // pred_fallthru
      _
    // Predicated region
    $region42: #{deep_gcfx_forward.4} parent=1 // pred_check
      _
    $region43: #{deep_gcfx_forward.4} parent=1 // pred_check_branch
      %52 = sbr.rel (0) target = $region45
    $region44: #{deep_gcfx_forward.4} parent=1 // pred_region
      _
    $region45: #{deep_gcfx_forward.4} parent=1 // pred_fallthru
      _
    // Predicated region
    $region46: #{deep_gcfx_forward.4} parent=1 // pred_check
      _
    $region47: #{deep_gcfx_forward.4} parent=1 // pred_check_branch
      %54 = sbr.rel (0) target = $region49
    $region48: #{deep_gcfx_forward.4} parent=1 // pred_region
      _
    $region49: #{deep_gcfx_forward.4} parent=1 // pred_fallthru
      _
    // Predicated region
    $region50: #{deep_gcfx_forward.4} parent=1 // pred_check
      _
    $region51: #{deep_gcfx_forward.4} parent=1 // pred_check_branch
      %56 = sbr.rel (0) target = $region53
    $region52: #{deep_gcfx_forward.4} parent=1 // pred_region
      _
    $region53: #{deep_gcfx_forward.4} parent=1 // pred_fallthru
      _
    // Predicated region
    $region54: #{deep_gcfx_forward.4} parent=1 // pred_check
      _
    $region55: #{deep_gcfx_forward.4} parent=1 // pred_check_branch
      %58 = sbr.rel (0) target = $region57
    $region56: #{deep_gcfx_forward.4} parent=1 // pred_region
      _
    $region57: #{deep_gcfx_forward.4} parent=1 // pred_fallthru
      _
    // Predicated region
    $region58: #{deep_gcfx_forward.4} parent=1 // pred_check
      _
    $region59: #{deep_gcfx_forward.4} parent=1 // pred_check_branch
      %60 = sbr.rel (0) target = $region61
    $region60: #{deep_gcfx_forward.4} parent=1 // pred_region
      _
    $region61: #{deep_gcfx_forward.4} parent=1 // pred_fallthru
      _
    // Predicated region
    $region62: #{deep_gcfx_forward.4} parent=1 // pred_check
      _
    $region63: #{deep_gcfx_forward.4} parent=1 // pred_check_branch
      %62 = sbr.rel (0) target = $region65
    $region64: #{deep_gcfx_forward.4} parent=1 // pred_region
      _
    $region65: #{deep_gcfx_forward.4} parent=1 // pred_fallthru
      _
    // Predicated region
    $region66: #{deep_gcfx_forward.4} parent=1 // pred_check
      _
    $region67: #{deep_gcfx_forward.4} parent=1 // pred_check_branch
      %64 = sbr.rel (0) target = $region69
    $region68: #{deep_gcfx_forward.4} parent=1 // pred_region
      _
    $region69: #{deep_gcfx_forward.4} parent=1 // pred_fallthru
      _
    %v65 = vld [vmem:[%s0] sm:$0xff]
    %v66 = vld [vmem:[%s0 + $0x8] sm:$0xff]
    %v67 = vld [vmem:[%s3] sm:$0xff]
    %v68 = vld [vmem:[%s4] sm:$0x1]
    %v70 = vlaneseq
    %v71 = vshrl.u32 %v70, 7
    %v72 = vsub.s32 0, %v71
    %v73 = vrot.slane %v68, %v72
    %vm75 = vcmask 64512
    %v77 = vsel %vm75, %v65, 0
    %v80 = vsel %vm75, %v66, 0
    %82 = vmatprep.subr.mxu0 0.0
    %83 = vmatpush1.msra.mxu0 %v67
    %84 = vmatprep.subr.mxu0 0.0
    %85 = vmatpush1.msra.mxu0 0.0
    %86 = vmatprep.subr.mxu0 0.0
    %87 = vmatpush1.msra.mxu0 0.0
    %88 = vmatprep.subr.mxu0 0.0
    %89 = vmatpush1.msra.mxu0 0.0
    %90 = vmatprep.subr.mxu0 0.0
    %91 = vmatpush1.msra.mxu0 0.0
    %92 = vmatprep.subr.mxu0 0.0
    %93 = vmatpush1.msra.mxu0 0.0
    %94 = vmatprep.subr.mxu0 0.0
    %95 = vmatpush1.msra.mxu0 0.0
    %96 = vmatprep.subr.mxu0 0.0
    %97 = vmatpush1.msra.mxu0 0.0
    %98 = vmatprep.subr.mxu0 0.0
    %99 = vmatpush1.msra.mxu0 0.0
    %100 = vmatprep.subr.mxu0 0.0
    %101 = vmatpush1.msra.mxu0 0.0
    %102 = vmatprep.subr.mxu0 0.0
    %103 = vmatpush1.msra.mxu0 0.0
    %104 = vmatprep.subr.mxu0 0.0
    %105 = vmatpush1.msra.mxu0 0.0
    %106 = vmatprep.subr.mxu0 0.0
    %107 = vmatpush1.msra.mxu0 0.0
    %108 = vmatprep.subr.mxu0 0.0
    %109 = vmatpush1.msra.mxu0 0.0
    %110 = vmatprep.subr.mxu0 0.0
    %111 = vmatpush1.msra.mxu0 0.0
    %112 = vmatprep.subr.mxu0 0.0
    %113 = vmatpush1.msra.mxu0 0.0
    %114 = vmatprep.subr.mxu0 0.0
    %115 = vmatpush1.msra.mxu0 0.0
    %116 = vmatprep.subr.mxu0 0.0
    %117 = vmatpush1.msra.mxu0 0.0
    %118 = vmatprep.subr.mxu0 0.0
    %119 = vmatpush1.msra.mxu0 0.0
    %120 = vmatprep.subr.mxu0 0.0
    %121 = vmatpush1.msra.mxu0 0.0
    %122 = vmatprep.subr.mxu0 0.0
    %123 = vmatpush1.msra.mxu0 0.0
    %124 = vmatprep.subr.mxu0 0.0
    %125 = vmatpush1.msra.mxu0 0.0
    %126 = vmatprep.subr.mxu0 0.0
    %127 = vmatpush1.msra.mxu0 0.0
    %128 = vmatprep.subr.mxu0 0.0
    %129 = vmatpush1.msra.mxu0 0.0
    %130 = vmatprep.subr.mxu0 0.0
    %131 = vmatpush1.msra.mxu0 0.0
    %132 = vmatprep.subr.mxu0 0.0
    %133 = vmatpush1.msra.mxu0 0.0
    %134 = vmatprep.subr.mxu0 0.0
    %135 = vmatpush1.msra.mxu0 0.0
    %136 = vmatprep.subr.mxu0 0.0
    %137 = vmatpush1.msra.mxu0 0.0
    %138 = vmatprep.subr.mxu0 0.0
    %139 = vmatpush1.msra.mxu0 0.0
    %140 = vmatprep.subr.mxu0 0.0
    %141 = vmatpush1.msra.mxu0 0.0
    %142 = vmatprep.subr.mxu0 0.0
    %143 = vmatpush1.msra.mxu0 0.0
    %144 = vmatprep.subr.mxu0 0.0
    %145 = vmatpush1.msra.mxu0 0.0
    %146 = vmatprep.mubr.f32.mxu0 0.0
    %147 = vmatmul.mubr.f32.gmra.mrb[0].mxu0 %v77
    %v148 = vpop.f32.mrb[0].mxu0
    %v149 = vadd.f32 %v73, %v148
    %v150 = vpop.f32.mrb[0].mxu0
    %151 = vmatprep.mubr.f32.mxu0 0.0
    %152 = vmatmul.mubr.f32.gmra.mrb[0].mxu0 %v80
    %v153 = vpop.f32.mrb[0].mxu0
    %v154 = vadd.f32 %v73, %v153
    %v155 = vpop.f32.mrb[0].mxu0
    %156 = vdwg.mxu0
    %v157 = vld [vmem:[%s5] sm:$0xff]
    %v158 = vld [vmem:[%s6] sm:$0x1]
    %v160 = vlaneseq
    %v161 = vshrl.u32 %v160, 7
    %v162 = vsub.s32 0, %v161
    %v163 = vrot.slane %v158, %v162
    %165 = vmatprep.subr.mxu0 0.0
    %166 = vmatpush1.msra.mxu0 %v157
    %167 = vmatprep.subr.mxu0 0.0
    %168 = vmatpush1.msra.mxu0 0.0
    %169 = vmatprep.subr.mxu0 0.0
    %170 = vmatpush1.msra.mxu0 0.0
    %171 = vmatprep.subr.mxu0 0.0
    %172 = vmatpush1.msra.mxu0 0.0
    %173 = vmatprep.subr.mxu0 0.0
    %174 = vmatpush1.msra.mxu0 0.0
    %175 = vmatprep.subr.mxu0 0.0
    %176 = vmatpush1.msra.mxu0 0.0
    %177 = vmatprep.subr.mxu0 0.0
    %178 = vmatpush1.msra.mxu0 0.0
    %179 = vmatprep.subr.mxu0 0.0
    %180 = vmatpush1.msra.mxu0 0.0
    %181 = vmatprep.subr.mxu0 0.0
    %182 = vmatpush1.msra.mxu0 0.0
    %183 = vmatprep.subr.mxu0 0.0
    %184 = vmatpush1.msra.mxu0 0.0
    %185 = vmatprep.subr.mxu0 0.0
    %186 = vmatpush1.msra.mxu0 0.0
    %187 = vmatprep.subr.mxu0 0.0
    %188 = vmatpush1.msra.mxu0 0.0
    %189 = vmatprep.subr.mxu0 0.0
    %190 = vmatpush1.msra.mxu0 0.0
    %191 = vmatprep.subr.mxu0 0.0
    %192 = vmatpush1.msra.mxu0 0.0
    %193 = vmatprep.subr.mxu0 0.0
    %194 = vmatpush1.msra.mxu0 0.0
    %195 = vmatprep.subr.mxu0 0.0
    %196 = vmatpush1.msra.mxu0 0.0
    %197 = vmatprep.subr.mxu0 0.0
    %198 = vmatpush1.msra.mxu0 0.0
    %199 = vmatprep.subr.mxu0 0.0
    %200 = vmatpush1.msra.mxu0 0.0
    %201 = vmatprep.subr.mxu0 0.0
    %202 = vmatpush1.msra.mxu0 0.0
    %203 = vmatprep.subr.mxu0 0.0
    %204 = vmatpush1.msra.mxu0 0.0
    %205 = vmatprep.subr.mxu0 0.0
    %206 = vmatpush1.msra.mxu0 0.0
    %207 = vmatprep.subr.mxu0 0.0
    %208 = vmatpush1.msra.mxu0 0.0
    %209 = vmatprep.subr.mxu0 0.0
    %210 = vmatpush1.msra.mxu0 0.0
    %211 = vmatprep.subr.mxu0 0.0
    %212 = vmatpush1.msra.mxu0 0.0
    %213 = vmatprep.subr.mxu0 0.0
    %214 = vmatpush1.msra.mxu0 0.0
    %215 = vmatprep.subr.mxu0 0.0
    %216 = vmatpush1.msra.mxu0 0.0
    %217 = vmatprep.subr.mxu0 0.0
    %218 = vmatpush1.msra.mxu0 0.0
    %219 = vmatprep.subr.mxu0 0.0
    %220 = vmatpush1.msra.mxu0 0.0
    %221 = vmatprep.subr.mxu0 0.0
    %222 = vmatpush1.msra.mxu0 0.0
    %223 = vmatprep.subr.mxu0 0.0
    %224 = vmatpush1.msra.mxu0 0.0
    %225 = vmatprep.subr.mxu0 0.0
    %226 = vmatpush1.msra.mxu0 0.0
    %227 = vmatprep.subr.mxu0 0.0
    %228 = vmatpush1.msra.mxu0 0.0
    %229 = vmatprep.mubr.f32.mxu0 0.0
    %230 = vmatmul.mubr.f32.gmra.mrb[0].mxu0 %v77
    %v231 = vpop.f32.mrb[0].mxu0
    %v232 = vadd.f32 %v163, %v231
    %v233 = vpop.f32.mrb[0].mxu0
    %234 = vmatprep.mubr.f32.mxu0 0.0
    %235 = vmatmul.mubr.f32.gmra.mrb[0].mxu0 %v80
    %v236 = vpop.f32.mrb[0].mxu0
    %v237 = vadd.f32 %v163, %v236
    %v238 = vpop.f32.mrb[0].mxu0
    %239 = vdwg.mxu0
    %v240 = vld [vmem:[%s7] sm:$0xff]
    %v241 = vld [vmem:[%s8] sm:$0x1]
    %v243 = vlaneseq
    %v244 = vshrl.u32 %v243, 7
    %v245 = vsub.s32 0, %v244
    %v246 = vrot.slane %v241, %v245
    %248 = vmatprep.subr.mxu0 0.0
    %249 = vmatpush1.msra.mxu0 %v240
    %250 = vmatprep.subr.mxu0 0.0
    %251 = vmatpush1.msra.mxu0 0.0
    %252 = vmatprep.subr.mxu0 0.0
    %253 = vmatpush1.msra.mxu0 0.0
    %254 = vmatprep.subr.mxu0 0.0
    %255 = vmatpush1.msra.mxu0 0.0
    %256 = vmatprep.subr.mxu0 0.0
    %257 = vmatpush1.msra.mxu0 0.0
    %258 = vmatprep.subr.mxu0 0.0
    %259 = vmatpush1.msra.mxu0 0.0
    %260 = vmatprep.subr.mxu0 0.0
    %261 = vmatpush1.msra.mxu0 0.0
    %262 = vmatprep.subr.mxu0 0.0
    %263 = vmatpush1.msra.mxu0 0.0
    %264 = vmatprep.subr.mxu0 0.0
    %265 = vmatpush1.msra.mxu0 0.0
    %266 = vmatprep.subr.mxu0 0.0
    %267 = vmatpush1.msra.mxu0 0.0
    %268 = vmatprep.subr.mxu0 0.0
    %269 = vmatpush1.msra.mxu0 0.0
    %270 = vmatprep.subr.mxu0 0.0
    %271 = vmatpush1.msra.mxu0 0.0
    %272 = vmatprep.subr.mxu0 0.0
    %273 = vmatpush1.msra.mxu0 0.0
    %274 = vmatprep.subr.mxu0 0.0
    %275 = vmatpush1.msra.mxu0 0.0
    %276 = vmatprep.subr.mxu0 0.0
    %277 = vmatpush1.msra.mxu0 0.0
    %278 = vmatprep.subr.mxu0 0.0
    %279 = vmatpush1.msra.mxu0 0.0
    %280 = vmatprep.subr.mxu0 0.0
    %281 = vmatpush1.msra.mxu0 0.0
    %282 = vmatprep.subr.mxu0 0.0
    %283 = vmatpush1.msra.mxu0 0.0
    %284 = vmatprep.subr.mxu0 0.0
    %285 = vmatpush1.msra.mxu0 0.0
    %286 = vmatprep.subr.mxu0 0.0
    %287 = vmatpush1.msra.mxu0 0.0
    %288 = vmatprep.subr.mxu0 0.0
    %289 = vmatpush1.msra.mxu0 0.0
    %290 = vmatprep.subr.mxu0 0.0
    %291 = vmatpush1.msra.mxu0 0.0
    %292 = vmatprep.subr.mxu0 0.0
    %293 = vmatpush1.msra.mxu0 0.0
    %294 = vmatprep.subr.mxu0 0.0
    %295 = vmatpush1.msra.mxu0 0.0
    %296 = vmatprep.subr.mxu0 0.0
    %297 = vmatpush1.msra.mxu0 0.0
    %298 = vmatprep.subr.mxu0 0.0
    %299 = vmatpush1.msra.mxu0 0.0
    %300 = vmatprep.subr.mxu0 0.0
    %301 = vmatpush1.msra.mxu0 0.0
    %302 = vmatprep.subr.mxu0 0.0
    %303 = vmatpush1.msra.mxu0 0.0
    %304 = vmatprep.subr.mxu0 0.0
    %305 = vmatpush1.msra.mxu0 0.0
    %306 = vmatprep.subr.mxu0 0.0
    %307 = vmatpush1.msra.mxu0 0.0
    %308 = vmatprep.subr.mxu0 0.0
    %309 = vmatpush1.msra.mxu0 0.0
    %310 = vmatprep.subr.mxu0 0.0
    %311 = vmatpush1.msra.mxu0 0.0
    %312 = vmatprep.mubr.f32.mxu0 0.0
    %313 = vmatmul.mubr.f32.gmra.mrb[0].mxu0 %v77
    %v314 = vpop.f32.mrb[0].mxu0
    %v315 = vadd.f32 %v246, %v314
    %v316 = vpop.f32.mrb[0].mxu0
    %317 = vmatprep.mubr.f32.mxu0 0.0
    %318 = vmatmul.mubr.f32.gmra.mrb[0].mxu0 %v80
    %v319 = vpop.f32.mrb[0].mxu0
    %v320 = vadd.f32 %v246, %v319
    %v321 = vpop.f32.mrb[0].mxu0
    %322 = vdwg.mxu0
    %v323 = vld [vmem:[%s9] sm:$0xff]
    %v324 = vld [vmem:[%s10] sm:$0x1]
    %v326 = vlaneseq
    %v327 = vshrl.u32 %v326, 7
    %v328 = vsub.s32 0, %v327
    %v329 = vrot.slane %v324, %v328
    %331 = vmatprep.subr.mxu0 0.0
    %332 = vmatpush1.msra.mxu0 %v323
    %333 = vmatprep.subr.mxu0 0.0
    %334 = vmatpush1.msra.mxu0 0.0
    %335 = vmatprep.subr.mxu0 0.0
    %336 = vmatpush1.msra.mxu0 0.0
    %337 = vmatprep.subr.mxu0 0.0
    %338 = vmatpush1.msra.mxu0 0.0
    %339 = vmatprep.subr.mxu0 0.0
    %340 = vmatpush1.msra.mxu0 0.0
    %341 = vmatprep.subr.mxu0 0.0
    %342 = vmatpush1.msra.mxu0 0.0
    %343 = vmatprep.subr.mxu0 0.0
    %344 = vmatpush1.msra.mxu0 0.0
    %345 = vmatprep.subr.mxu0 0.0
    %346 = vmatpush1.msra.mxu0 0.0
    %347 = vmatprep.subr.mxu0 0.0
    %348 = vmatpush1.msra.mxu0 0.0
    %349 = vmatprep.subr.mxu0 0.0
    %350 = vmatpush1.msra.mxu0 0.0
    %351 = vmatprep.subr.mxu0 0.0
    %352 = vmatpush1.msra.mxu0 0.0
    %353 = vmatprep.subr.mxu0 0.0
    %354 = vmatpush1.msra.mxu0 0.0
    %355 = vmatprep.subr.mxu0 0.0
    %356 = vmatpush1.msra.mxu0 0.0
    %357 = vmatprep.subr.mxu0 0.0
    %358 = vmatpush1.msra.mxu0 0.0
    %359 = vmatprep.subr.mxu0 0.0
    %360 = vmatpush1.msra.mxu0 0.0
    %361 = vmatprep.subr.mxu0 0.0
    %362 = vmatpush1.msra.mxu0 0.0
    %363 = vmatprep.subr.mxu0 0.0
    %364 = vmatpush1.msra.mxu0 0.0
    %365 = vmatprep.subr.mxu0 0.0
    %366 = vmatpush1.msra.mxu0 0.0
    %367 = vmatprep.subr.mxu0 0.0
    %368 = vmatpush1.msra.mxu0 0.0
    %369 = vmatprep.subr.mxu0 0.0
    %370 = vmatpush1.msra.mxu0 0.0
    %371 = vmatprep.subr.mxu0 0.0
    %372 = vmatpush1.msra.mxu0 0.0
    %373 = vmatprep.subr.mxu0 0.0
    %374 = vmatpush1.msra.mxu0 0.0
    %375 = vmatprep.subr.mxu0 0.0
    %376 = vmatpush1.msra.mxu0 0.0
    %377 = vmatprep.subr.mxu0 0.0
    %378 = vmatpush1.msra.mxu0 0.0
    %379 = vmatprep.subr.mxu0 0.0
    %380 = vmatpush1.msra.mxu0 0.0
    %381 = vmatprep.subr.mxu0 0.0
    %382 = vmatpush1.msra.mxu0 0.0
    %383 = vmatprep.subr.mxu0 0.0
    %384 = vmatpush1.msra.mxu0 0.0
    %385 = vmatprep.subr.mxu0 0.0
    %386 = vmatpush1.msra.mxu0 0.0
    %387 = vmatprep.subr.mxu0 0.0
    %388 = vmatpush1.msra.mxu0 0.0
    %389 = vmatprep.subr.mxu0 0.0
    %390 = vmatpush1.msra.mxu0 0.0
    %391 = vmatprep.subr.mxu0 0.0
    %392 = vmatpush1.msra.mxu0 0.0
    %393 = vmatprep.subr.mxu0 0.0
    %394 = vmatpush1.msra.mxu0 0.0
    %395 = vmatprep.mubr.f32.mxu0 0.0
    %396 = vmatmul.mubr.f32.gmra.mrb[0].mxu0 %v77
    %v397 = vpop.f32.mrb[0].mxu0
    %v398 = vadd.f32 %v329, %v397
    %v399 = vpop.f32.mrb[0].mxu0
    %400 = vmatprep.mubr.f32.mxu0 0.0
    %401 = vmatmul.mubr.f32.gmra.mrb[0].mxu0 %v80
    %v402 = vpop.f32.mrb[0].mxu0
    %v403 = vadd.f32 %v329, %v402
    %v404 = vpop.f32.mrb[0].mxu0
    %405 = vdwg.mxu0
    %v406 = vld [vmem:[%s1] sm:$0x3]
    %vm407 = vcmask 130048
    %v409 = vsel %vm407, %v406, 0
    %411 = vmatprep.subr.mxu0 0.0
    %412 = vmatpush1.msra.mxu0 %v149
    %413 = vmatprep.subr.mxu0 0.0
    %414 = vmatpush1.msra.mxu0 %v154
    %415 = vmatprep.subr.mxu0 0.0
    %416 = vmatpush1.msra.mxu0 0.0
    %417 = vmatprep.subr.mxu0 0.0
    %418 = vmatpush1.msra.mxu0 0.0
    %419 = vmatprep.subr.mxu0 0.0
    %420 = vmatpush1.msra.mxu0 0.0
    %421 = vmatprep.subr.mxu0 0.0
    %422 = vmatpush1.msra.mxu0 0.0
    %423 = vmatprep.subr.mxu0 0.0
    %424 = vmatpush1.msra.mxu0 0.0
    %425 = vmatprep.subr.mxu0 0.0
    %426 = vmatpush1.msra.mxu0 0.0
    %427 = vmatprep.subr.mxu0 0.0
    %428 = vmatpush1.msra.mxu0 0.0
    %429 = vmatprep.subr.mxu0 0.0
    %430 = vmatpush1.msra.mxu0 0.0
    %431 = vmatprep.subr.mxu0 0.0
    %432 = vmatpush1.msra.mxu0 0.0
    %433 = vmatprep.subr.mxu0 0.0
    %434 = vmatpush1.msra.mxu0 0.0
    %435 = vmatprep.subr.mxu0 0.0
    %436 = vmatpush1.msra.mxu0 0.0
    %437 = vmatprep.subr.mxu0 0.0
    %438 = vmatpush1.msra.mxu0 0.0
    %439 = vmatprep.subr.mxu0 0.0
    %440 = vmatpush1.msra.mxu0 0.0
    %441 = vmatprep.subr.mxu0 0.0
    %442 = vmatpush1.msra.mxu0 0.0
    %443 = vmatprep.subr.mxu0 0.0
    %444 = vmatpush1.msra.mxu0 0.0
    %445 = vmatprep.subr.mxu0 0.0
    %446 = vmatpush1.msra.mxu0 0.0
    %447 = vmatprep.subr.mxu0 0.0
    %448 = vmatpush1.msra.mxu0 0.0
    %449 = vmatprep.subr.mxu0 0.0
    %450 = vmatpush1.msra.mxu0 0.0
    %451 = vmatprep.subr.mxu0 0.0
    %452 = vmatpush1.msra.mxu0 0.0
    %453 = vmatprep.subr.mxu0 0.0
    %454 = vmatpush1.msra.mxu0 0.0
    %455 = vmatprep.subr.mxu0 0.0
    %456 = vmatpush1.msra.mxu0 0.0
    %457 = vmatprep.subr.mxu0 0.0
    %458 = vmatpush1.msra.mxu0 0.0
    %459 = vmatprep.subr.mxu0 0.0
    %460 = vmatpush1.msra.mxu0 0.0
    %461 = vmatprep.subr.mxu0 0.0
    %462 = vmatpush1.msra.mxu0 0.0
    %463 = vmatprep.subr.mxu0 0.0
    %464 = vmatpush1.msra.mxu0 0.0
    %465 = vmatprep.subr.mxu0 0.0
    %466 = vmatpush1.msra.mxu0 0.0
    %467 = vmatprep.subr.mxu0 0.0
    %468 = vmatpush1.msra.mxu0 0.0
    %469 = vmatprep.subr.mxu0 0.0
    %470 = vmatpush1.msra.mxu0 0.0
    %471 = vmatprep.subr.mxu0 0.0
    %472 = vmatpush1.msra.mxu0 0.0
    %473 = vmatprep.subr.mxu0 0.0
    %474 = vmatpush1.msra.mxu0 0.0
    %475 = vmatprep.mubr.f32.mxu0 0.0
    %476 = vmatmul.mubr.f32.gmra.mrb[0].mxu0 %v409
    %v477 = vpop.f32.mrb[0].mxu0
    %v478 = vadd.f32 0.0, %v477
    %v479 = vpop.f32.mrb[0].mxu0
    %480 = vdwg.mxu0
    %481 = vmatprep.subr.mxu0 0.0
    %482 = vmatpush1.msra.mxu0 %v232
    %483 = vmatprep.subr.mxu0 0.0
    %484 = vmatpush1.msra.mxu0 %v237
    %485 = vmatprep.subr.mxu0 0.0
    %486 = vmatpush1.msra.mxu0 0.0
    %487 = vmatprep.subr.mxu0 0.0
    %488 = vmatpush1.msra.mxu0 0.0
    %489 = vmatprep.subr.mxu0 0.0
    %490 = vmatpush1.msra.mxu0 0.0
    %491 = vmatprep.subr.mxu0 0.0
    %492 = vmatpush1.msra.mxu0 0.0
    %493 = vmatprep.subr.mxu0 0.0
    %494 = vmatpush1.msra.mxu0 0.0
    %495 = vmatprep.subr.mxu0 0.0
    %496 = vmatpush1.msra.mxu0 0.0
    %497 = vmatprep.subr.mxu0 0.0
    %498 = vmatpush1.msra.mxu0 0.0
    %499 = vmatprep.subr.mxu0 0.0
    %500 = vmatpush1.msra.mxu0 0.0
    %501 = vmatprep.subr.mxu0 0.0
    %502 = vmatpush1.msra.mxu0 0.0
    %503 = vmatprep.subr.mxu0 0.0
    %504 = vmatpush1.msra.mxu0 0.0
    %505 = vmatprep.subr.mxu0 0.0
    %506 = vmatpush1.msra.mxu0 0.0
    %507 = vmatprep.subr.mxu0 0.0
    %508 = vmatpush1.msra.mxu0 0.0
    %509 = vmatprep.subr.mxu0 0.0
    %510 = vmatpush1.msra.mxu0 0.0
    %511 = vmatprep.subr.mxu0 0.0
    %512 = vmatpush1.msra.mxu0 0.0
    %513 = vmatprep.subr.mxu0 0.0
    %514 = vmatpush1.msra.mxu0 0.0
    %515 = vmatprep.subr.mxu0 0.0
    %516 = vmatpush1.msra.mxu0 0.0
    %517 = vmatprep.subr.mxu0 0.0
    %518 = vmatpush1.msra.mxu0 0.0
    %519 = vmatprep.subr.mxu0 0.0
    %520 = vmatpush1.msra.mxu0 0.0
    %521 = vmatprep.subr.mxu0 0.0
    %522 = vmatpush1.msra.mxu0 0.0
    %523 = vmatprep.subr.mxu0 0.0
    %524 = vmatpush1.msra.mxu0 0.0
    %525 = vmatprep.subr.mxu0 0.0
    %526 = vmatpush1.msra.mxu0 0.0
    %527 = vmatprep.subr.mxu0 0.0
    %528 = vmatpush1.msra.mxu0 0.0
    %529 = vmatprep.subr.mxu0 0.0
    %530 = vmatpush1.msra.mxu0 0.0
    %531 = vmatprep.subr.mxu0 0.0
    %532 = vmatpush1.msra.mxu0 0.0
    %533 = vmatprep.subr.mxu0 0.0
    %534 = vmatpush1.msra.mxu0 0.0
    %535 = vmatprep.subr.mxu0 0.0
    %536 = vmatpush1.msra.mxu0 0.0
    %537 = vmatprep.subr.mxu0 0.0
    %538 = vmatpush1.msra.mxu0 0.0
    %539 = vmatprep.subr.mxu0 0.0
    %540 = vmatpush1.msra.mxu0 0.0
    %541 = vmatprep.subr.mxu0 0.0
    %542 = vmatpush1.msra.mxu0 0.0
    %543 = vmatprep.subr.mxu0 0.0
    %544 = vmatpush1.msra.mxu0 0.0
    %545 = vmatprep.mubr.f32.mxu0 0.0
    %546 = vmatmul.mubr.f32.gmra.mrb[0].mxu0 %v409
    %v547 = vpop.f32.mrb[0].mxu0
    %v548 = vadd.f32 0.0, %v547
    %v549 = vpop.f32.mrb[0].mxu0
    %550 = vdwg.mxu0
    %v551 = vmul.f32 %v232, 2.0
    %v552 = vmul.f32 %v237, 2.0
    %v553 = vadd.f32 %v551, 1.0
    %v554 = vadd.f32 %v552, 1.0
    %v555 = vmul.f32 %v149, %v149
    %v556 = vmul.f32 %v154, %v154
    %v557 = vsub.f32 %v553, %v555
    %v558 = vsub.f32 %v554, %v556
    %v559 = vmul.f32 %v232, 1.442695
    %v560 = vpow.pop %v559
    %v561 = vmul.f32 %v237, 1.442695
    %v562 = vpow.pop %v561
    %v563 = vmul.f32 %v560, %v560
    %v564 = vmul.f32 %v562, %v562
    %v565 = vsub.f32 %v557, %v563
    %v566 = vsub.f32 %v558, %v564
    %vm567 = vcmask 261120
    %v568 = vsel %vm567, %v565, 0.0
    %569 = vadd.xlane.f32.xlu0 %v568
    %v570 = vpop.xlane.xlu0 %569
    %v571 = vsel %vm567, %v566, 0.0
    %572 = vadd.xlane.f32.xlu0 %v571
    %v573 = vpop.xlane.xlu0 %572
    %v574 = vadd.f32 %v570, %v573
    %v575 = vrot.slane %v574, 4
    %v576 = vadd.f32 %v574, %v575
    %v577 = vrot.slane %v576, 2
    %v578 = vadd.f32 %v576, %v577
    %v579 = vrot.slane %v578, 1
    %v580 = vadd.f32 %v578, %v579
    %v581 = vrcp.pop 16.0
    %v582 = vmul.f32 %v580, %v581
    %v583 = vmul.f32 %v582, -0.03125
    %vm584 = vcmask 0
    %585 = vst.msk [vmem:[#allocation6] sm:$0x1] %vm584, %v583
    %v586 = vmul.f32 %v548, 2.0
    %v587 = vadd.f32 %v586, 1.0
    %v588 = vmul.f32 %v478, %v478
    %v589 = vsub.f32 %v587, %v588
    %v590 = vmul.f32 %v548, 1.442695
    %v591 = vpow.pop %v590
    %v592 = vmul.f32 %v591, %v591
    %v593 = vsub.f32 %v589, %v592
    %vm594 = vcmask 254976
    %v595 = vsel %vm594, %v593, 0.0
    %596 = vadd.xlane.f32.xlu0 %v595
    %v597 = vpop.xlane.xlu0 %596
    %vm598 = vcmask 1041408
    %v599 = vsel %vm598, %v597, 0.0
    %v600 = vrot.slane %v599, 4
    %v601 = vadd.f32 %v599, %v600
    %v602 = vrot.slane %v601, 2
    %v603 = vadd.f32 %v601, %v602
    %v604 = vrot.slane %v603, 1
    %v605 = vadd.f32 %v603, %v604
    %v606 = vrcp.pop 2.0
    %v607 = vmul.f32 %v605, %v606
    %v608 = vmul.f32 %v607, -0.025
    %609 = vst.msk [vmem:[#allocation7] sm:$0x1] %vm584, %v608
    %v610 = vld [vmem:[%s14] sm:$0xff]
    %v611 = vld [vmem:[%s14 + $0x8] sm:$0xff]
    %v612 = vmul.f32 %v232, 0.5
    %v613 = vmul.f32 %v237, 0.5
    %v614 = vmul.f32 %v612, 1.442695
    %v615 = vpow.pop %v614
    %v616 = vmul.f32 %v613, 1.442695
    %v617 = vpow.pop %v616
    %v618 = vmul.f32 %v610, %v615
    %v619 = vmul.f32 %v611, %v617
    %v620 = vadd.f32 %v149, %v618
    %v621 = vadd.f32 %v154, %v619
    %v622 = vld [vmem:[%s15] sm:$0xff]
    %v623 = vld [vmem:[%s15 + $0x8] sm:$0xff]
    %v624 = vmul.f32 %v398, 0.5
    %v625 = vmul.f32 %v403, 0.5
    %v626 = vmul.f32 %v624, 1.442695
    %v627 = vpow.pop %v626
    %v628 = vmul.f32 %v625, 1.442695
    %v629 = vpow.pop %v628
    %v630 = vmul.f32 %v622, %v627
    %v631 = vmul.f32 %v623, %v629
    %v632 = vadd.f32 %v315, %v630
    %v633 = vadd.f32 %v320, %v631
    %v634 = vld [vmem:[%s16] sm:$0x3]
    %v635 = vmul.f32 %v548, 0.5
    %v636 = vmul.f32 %v635, 1.442695
    %v637 = vpow.pop %v636
    %v638 = vmul.f32 %v634, %v637
    %v639 = vadd.f32 %v478, %v638
    %v640 = vld [vmem:[%s2] sm:$0xff]
    %v641 = vld [vmem:[%s2 + $0x8] sm:$0xff]
    %vm642 = vcmask 15360
    %v644 = vsel %vm642, %v640, 0
    %v647 = vsel %vm642, %v641, 0
    %v650 = vsel %vm598, %v639, 0
    %652 = vmatprep.subr.mxu0 0.0
    %653 = vmatpush1.msra.mxu0 %v650
    %654 = vmatprep.subr.mxu0 0.0
    %655 = vmatpush1.msra.mxu0 0.0
    %656 = vmatprep.subr.mxu0 0.0
    %657 = vmatpush1.msra.mxu0 0.0
    %658 = vmatprep.subr.mxu0 0.0
    %659 = vmatpush1.msra.mxu0 0.0
    %660 = vmatprep.subr.mxu0 0.0
    %661 = vmatpush1.msra.mxu0 0.0
    %662 = vmatprep.subr.mxu0 0.0
    %663 = vmatpush1.msra.mxu0 0.0
    %664 = vmatprep.subr.mxu0 0.0
    %665 = vmatpush1.msra.mxu0 0.0
    %666 = vmatprep.subr.mxu0 0.0
    %667 = vmatpush1.msra.mxu0 0.0
    %668 = vmatprep.subr.mxu0 0.0
    %669 = vmatpush1.msra.mxu0 0.0
    %670 = vmatprep.subr.mxu0 0.0
    %671 = vmatpush1.msra.mxu0 0.0
    %672 = vmatprep.subr.mxu0 0.0
    %673 = vmatpush1.msra.mxu0 0.0
    %674 = vmatprep.subr.mxu0 0.0
    %675 = vmatpush1.msra.mxu0 0.0
    %676 = vmatprep.subr.mxu0 0.0
    %677 = vmatpush1.msra.mxu0 0.0
    %678 = vmatprep.subr.mxu0 0.0
    %679 = vmatpush1.msra.mxu0 0.0
    %680 = vmatprep.subr.mxu0 0.0
    %681 = vmatpush1.msra.mxu0 0.0
    %682 = vmatprep.subr.mxu0 0.0
    %683 = vmatpush1.msra.mxu0 0.0
    %684 = vmatprep.subr.mxu0 0.0
    %685 = vmatpush1.msra.mxu0 0.0
    %686 = vmatprep.subr.mxu0 0.0
    %687 = vmatpush1.msra.mxu0 0.0
    %688 = vmatprep.subr.mxu0 0.0
    %689 = vmatpush1.msra.mxu0 0.0
    %690 = vmatprep.subr.mxu0 0.0
    %691 = vmatpush1.msra.mxu0 0.0
    %692 = vmatprep.subr.mxu0 0.0
    %693 = vmatpush1.msra.mxu0 0.0
    %694 = vmatprep.subr.mxu0 0.0
    %695 = vmatpush1.msra.mxu0 0.0
    %696 = vmatprep.subr.mxu0 0.0
    %697 = vmatpush1.msra.mxu0 0.0
    %698 = vmatprep.subr.mxu0 0.0
    %699 = vmatpush1.msra.mxu0 0.0
    %700 = vmatprep.subr.mxu0 0.0
    %701 = vmatpush1.msra.mxu0 0.0
    %702 = vmatprep.subr.mxu0 0.0
    %703 = vmatpush1.msra.mxu0 0.0
    %704 = vmatprep.subr.mxu0 0.0
    %705 = vmatpush1.msra.mxu0 0.0
    %706 = vmatprep.subr.mxu0 0.0
    %707 = vmatpush1.msra.mxu0 0.0
    %708 = vmatprep.subr.mxu0 0.0
    %709 = vmatpush1.msra.mxu0 0.0
    %710 = vmatprep.subr.mxu0 0.0
    %711 = vmatpush1.msra.mxu0 0.0
    %712 = vmatprep.subr.mxu0 0.0
    %713 = vmatpush1.msra.mxu0 0.0
    %714 = vmatprep.subr.mxu0 0.0
    %715 = vmatpush1.msra.mxu0 0.0
    %716 = vmatprep.mubr.f32.mxu0 0.0
    %717 = vmatmul.mubr.f32.gmra.mrb[0].mxu0 %v644
    %v718 = vpop.f32.mrb[0].mxu0
    %v719 = vadd.f32 0.0, %v718
    %v720 = vpop.f32.mrb[0].mxu0
    %721 = vmatprep.mubr.f32.mxu0 0.0
    %722 = vmatmul.mubr.f32.gmra.mrb[0].mxu0 %v647
    %v723 = vpop.f32.mrb[0].mxu0
    %v724 = vadd.f32 0.0, %v723
    %v725 = vpop.f32.mrb[0].mxu0
    %726 = vdwg.mxu0
    %v727 = vld [vmem:[%s11] sm:$0xff]
    %v728 = vld [vmem:[%s11 + $0x8] sm:$0xff]
    %v729 = vld [vmem:[%s11 + $0x10] sm:$0xff]
    %v730 = vld [vmem:[%s11 + $0x18] sm:$0xff]
    %v731 = vld [vmem:[%s12] sm:$0xff]
    %v732 = vld [vmem:[%s12 + $0x8] sm:$0xff]
    %v733 = vld [vmem:[%s12 + $0x10] sm:$0xff]
    %v734 = vld [vmem:[%s12 + $0x18] sm:$0xff]
    %v736 = vsel %vm567, %v620, 0
    %v739 = vsel %vm567, %v621, 0
    %741 = vmatprep.subr.mxu0 0.0
    %742 = vmatpush1.msra.mxu0 %v731
    %743 = vmatprep.subr.mxu0 0.0
    %744 = vmatpush1.msra.mxu0 %v732
    %745 = vmatprep.subr.mxu0 0.0
    %746 = vmatpush1.msra.mxu0 %v733
    %747 = vmatprep.subr.mxu0 0.0
    %748 = vmatpush1.msra.mxu0 %v734
    %749 = vmatprep.subr.mxu0 0.0
    %750 = vmatpush1.msra.mxu0 0.0
    %751 = vmatprep.subr.mxu0 0.0
    %752 = vmatpush1.msra.mxu0 0.0
    %753 = vmatprep.subr.mxu0 0.0
    %754 = vmatpush1.msra.mxu0 0.0
    %755 = vmatprep.subr.mxu0 0.0
    %756 = vmatpush1.msra.mxu0 0.0
    %757 = vmatprep.subr.mxu0 0.0
    %758 = vmatpush1.msra.mxu0 0.0
    %759 = vmatprep.subr.mxu0 0.0
    %760 = vmatpush1.msra.mxu0 0.0
    %761 = vmatprep.subr.mxu0 0.0
    %762 = vmatpush1.msra.mxu0 0.0
    %763 = vmatprep.subr.mxu0 0.0
    %764 = vmatpush1.msra.mxu0 0.0
    %765 = vmatprep.subr.mxu0 0.0
    %766 = vmatpush1.msra.mxu0 0.0
    %767 = vmatprep.subr.mxu0 0.0
    %768 = vmatpush1.msra.mxu0 0.0
    %769 = vmatprep.subr.mxu0 0.0
    %770 = vmatpush1.msra.mxu0 0.0
    %771 = vmatprep.subr.mxu0 0.0
    %772 = vmatpush1.msra.mxu0 0.0
    %773 = vmatprep.subr.mxu0 0.0
    %774 = vmatpush1.msra.mxu0 0.0
    %775 = vmatprep.subr.mxu0 0.0
    %776 = vmatpush1.msra.mxu0 0.0
    %777 = vmatprep.subr.mxu0 0.0
    %778 = vmatpush1.msra.mxu0 0.0
    %779 = vmatprep.subr.mxu0 0.0
    %780 = vmatpush1.msra.mxu0 0.0
    %781 = vmatprep.subr.mxu0 0.0
    %782 = vmatpush1.msra.mxu0 0.0
    %783 = vmatprep.subr.mxu0 0.0
    %784 = vmatpush1.msra.mxu0 0.0
    %785 = vmatprep.subr.mxu0 0.0
    %786 = vmatpush1.msra.mxu0 0.0
    %787 = vmatprep.subr.mxu0 0.0
    %788 = vmatpush1.msra.mxu0 0.0
    %789 = vmatprep.subr.mxu0 0.0
    %790 = vmatpush1.msra.mxu0 0.0
    %791 = vmatprep.subr.mxu0 0.0
    %792 = vmatpush1.msra.mxu0 0.0
    %793 = vmatprep.subr.mxu0 0.0
    %794 = vmatpush1.msra.mxu0 0.0
    %795 = vmatprep.subr.mxu0 0.0
    %796 = vmatpush1.msra.mxu0 0.0
    %797 = vmatprep.subr.mxu0 0.0
    %798 = vmatpush1.msra.mxu0 0.0
    %799 = vmatprep.subr.mxu0 0.0
    %800 = vmatpush1.msra.mxu0 0.0
    %801 = vmatprep.subr.mxu0 0.0
    %802 = vmatpush1.msra.mxu0 0.0
    %803 = vmatprep.subr.mxu0 0.0
    %804 = vmatpush1.msra.mxu0 0.0
    %805 = vmatprep.mubr.f32.mxu0 0.0
    %806 = vmatmul.mubr.f32.gmra.mrb[0].mxu0 %v736
    %v807 = vpop.f32.mrb[0].mxu0
    %v808 = vadd.f32 0.0, %v807
    %v809 = vpop.f32.mrb[0].mxu0
    %810 = vmatprep.mubr.f32.mxu0 0.0
    %811 = vmatmul.mubr.f32.gmra.mrb[0].mxu0 %v739
    %v812 = vpop.f32.mrb[0].mxu0
    %v813 = vadd.f32 0.0, %v812
    %v814 = vpop.f32.mrb[0].mxu0
    %815 = vdwg.mxu0
    %v817 = vsel %vm567, %v719, 0
    %v820 = vsel %vm567, %v724, 0
    %822 = vmatprep.subr.mxu0 0.0
    %823 = vmatpush1.msra.mxu0 %v727
    %824 = vmatprep.subr.mxu0 0.0
    %825 = vmatpush1.msra.mxu0 %v728
    %826 = vmatprep.subr.mxu0 0.0
    %827 = vmatpush1.msra.mxu0 %v729
    %828 = vmatprep.subr.mxu0 0.0
    %829 = vmatpush1.msra.mxu0 %v730
    %830 = vmatprep.subr.mxu0 0.0
    %831 = vmatpush1.msra.mxu0 0.0
    %832 = vmatprep.subr.mxu0 0.0
    %833 = vmatpush1.msra.mxu0 0.0
    %834 = vmatprep.subr.mxu0 0.0
    %835 = vmatpush1.msra.mxu0 0.0
    %836 = vmatprep.subr.mxu0 0.0
    %837 = vmatpush1.msra.mxu0 0.0
    %838 = vmatprep.subr.mxu0 0.0
    %839 = vmatpush1.msra.mxu0 0.0
    %840 = vmatprep.subr.mxu0 0.0
    %841 = vmatpush1.msra.mxu0 0.0
    %842 = vmatprep.subr.mxu0 0.0
    %843 = vmatpush1.msra.mxu0 0.0
    %844 = vmatprep.subr.mxu0 0.0
    %845 = vmatpush1.msra.mxu0 0.0
    %846 = vmatprep.subr.mxu0 0.0
    %847 = vmatpush1.msra.mxu0 0.0
    %848 = vmatprep.subr.mxu0 0.0
    %849 = vmatpush1.msra.mxu0 0.0
    %850 = vmatprep.subr.mxu0 0.0
    %851 = vmatpush1.msra.mxu0 0.0
    %852 = vmatprep.subr.mxu0 0.0
    %853 = vmatpush1.msra.mxu0 0.0
    %854 = vmatprep.subr.mxu0 0.0
    %855 = vmatpush1.msra.mxu0 0.0
    %856 = vmatprep.subr.mxu0 0.0
    %857 = vmatpush1.msra.mxu0 0.0
    %858 = vmatprep.subr.mxu0 0.0
    %859 = vmatpush1.msra.mxu0 0.0
    %860 = vmatprep.subr.mxu0 0.0
    %861 = vmatpush1.msra.mxu0 0.0
    %862 = vmatprep.subr.mxu0 0.0
    %863 = vmatpush1.msra.mxu0 0.0
    %864 = vmatprep.subr.mxu0 0.0
    %865 = vmatpush1.msra.mxu0 0.0
    %866 = vmatprep.subr.mxu0 0.0
    %867 = vmatpush1.msra.mxu0 0.0
    %868 = vmatprep.subr.mxu0 0.0
    %869 = vmatpush1.msra.mxu0 0.0
    %870 = vmatprep.subr.mxu0 0.0
    %871 = vmatpush1.msra.mxu0 0.0
    %872 = vmatprep.subr.mxu0 0.0
    %873 = vmatpush1.msra.mxu0 0.0
    %874 = vmatprep.subr.mxu0 0.0
    %875 = vmatpush1.msra.mxu0 0.0
    %876 = vmatprep.subr.mxu0 0.0
    %877 = vmatpush1.msra.mxu0 0.0
    %878 = vmatprep.subr.mxu0 0.0
    %879 = vmatpush1.msra.mxu0 0.0
    %880 = vmatprep.subr.mxu0 0.0
    %881 = vmatpush1.msra.mxu0 0.0
    %882 = vmatprep.subr.mxu0 0.0
    %883 = vmatpush1.msra.mxu0 0.0
    %884 = vmatprep.subr.mxu0 0.0
    %885 = vmatpush1.msra.mxu0 0.0
    %886 = vmatprep.mubr.f32.mxu0 0.0
    %887 = vmatmul.mubr.f32.gmra.mrb[0].mxu0 %v817
    %v888 = vpop.f32.mrb[0].mxu0
    %v889 = vadd.f32 %v808, %v888
    %v890 = vpop.f32.mrb[0].mxu0
    %891 = vmatprep.mubr.f32.mxu0 0.0
    %892 = vmatmul.mubr.f32.gmra.mrb[0].mxu0 %v820
    %v893 = vpop.f32.mrb[0].mxu0
    %v894 = vadd.f32 %v813, %v893
    %v895 = vpop.f32.mrb[0].mxu0
    %896 = vdwg.mxu0
    %v897 = vld [vmem:[%s13] sm:$0x1]
    %v899 = vlaneseq
    %v900 = vshrl.u32 %v899, 7
    %v901 = vsub.s32 0, %v900
    %v902 = vrot.slane %v897, %v901
    %v904 = vadd.f32 %v889, %v902
    %v905 = vadd.f32 %v894, %v902
    %v906 = vmax.f32 %v904, 0.0
    %v907 = vmax.f32 %v905, 0.0
    %908 = vst.msk [vmem:[%s17] sm:$0xff] %vm567, %v906
    %909 = vst.msk [vmem:[%s17 + $0x8] sm:$0xff] %vm567, %v907
    %910 = vst.msk [vmem:[%s18] sm:$0xff] %vm567, %v632
    %911 = vst.msk [vmem:[%s18 + $0x8] sm:$0xff] %vm567, %v633
    %912 = vst.msk [vmem:[#allocation2] sm:$0xff] %vm567, %v620
    %913 = vst.msk [vmem:[#allocation2 + $0x8] sm:$0xff] %vm567, %v621
    %914 = vst.msk [vmem:[#allocation4] sm:$0x3] %vm594, %v639
    // Predicated region
    $region70: #{deep_gcfx_forward.4} parent=1 // pred_check
      _
    $region71: #{deep_gcfx_forward.4} parent=1 // pred_check_branch
      %916 = sbr.rel (0) target = $region73
    $region72: #{deep_gcfx_forward.4} parent=1 // pred_region
      _
    $region73: #{deep_gcfx_forward.4} parent=1 // pred_fallthru
      _
    // Predicated region
    $region74: #{deep_gcfx_forward.4} parent=1 // pred_check
      _
    $region75: #{deep_gcfx_forward.4} parent=1 // pred_check_branch
      %918 = sbr.rel (0) target = $region77
    $region76: #{deep_gcfx_forward.4} parent=1 // pred_region
      _
    $region77: #{deep_gcfx_forward.4} parent=1 // pred_fallthru
      _
    // Predicated region
    $region78: #{deep_gcfx_forward.4} parent=1 // pred_check
      _
    $region79: #{deep_gcfx_forward.4} parent=1 // pred_check_branch
      %920 = sbr.rel (0) target = $region81
    $region80: #{deep_gcfx_forward.4} parent=1 // pred_region
      %s922 = ssub.s32 256, 256
      %923 = vsyncadd [#allocation3], %s922
      %s924 = sshll.u32 [#allocation2], 4
      %s925 = int_to_ptr.vmem [resolvable:$true] %s924
      %930 = dma.vmem_to_hbm [thread:$0]  %s925, 256, %s19, [#allocation3], 128, 128, 8
    $region81: #{deep_gcfx_forward.4} parent=1 // pred_fallthru
      _
    // Predicated region
    $region82: #{deep_gcfx_forward.4} parent=1 // pred_check
      _
    $region83: #{deep_gcfx_forward.4} parent=1 // pred_check_branch
      %932 = sbr.rel (0) target = $region85
    $region84: #{deep_gcfx_forward.4} parent=1 // pred_region
      %s934 = ssub.s32 32, 32
      %935 = vsyncadd [#allocation5], %s934
      %s937 = sshll.u32 [#allocation4], 4
      %s938 = int_to_ptr.vmem [resolvable:$true] %s937
      %940 = dma.vmem_to_hbm [thread:$0]  %s938, 32, %s20, [#allocation5]
    $region85: #{deep_gcfx_forward.4} parent=1 // pred_fallthru
      _
    // Predicated region
    $region86: #{deep_gcfx_forward.4} parent=1 // pred_check
      _
    $region87: #{deep_gcfx_forward.4} parent=1 // pred_check_branch
      %942 = sbr.rel (0) target = $region89
    $region88: #{deep_gcfx_forward.4} parent=1 // pred_region
      %s944 = ssub.s32 16, 16
      %945 = vsyncadd [#allocation5], %s944
      %s947 = sshll.u32 [#allocation6], 4
      %s948 = int_to_ptr.vmem [resolvable:$true] %s947
      %950 = dma.vmem_to_hbm [thread:$0]  %s948, 16, %s21, [#allocation5]
    $region89: #{deep_gcfx_forward.4} parent=1 // pred_fallthru
      _
    // Predicated region
    $region90: #{deep_gcfx_forward.4} parent=1 // pred_check
      _
    $region91: #{deep_gcfx_forward.4} parent=1 // pred_check_branch
      %952 = sbr.rel (0) target = $region93
    $region92: #{deep_gcfx_forward.4} parent=1 // pred_region
      %s954 = ssub.s32 16, 16
      %955 = vsyncadd [#allocation8], %s954
      %s957 = sshll.u32 [#allocation7], 4
      %s958 = int_to_ptr.vmem [resolvable:$true] %s957
      %960 = dma.vmem_to_hbm [thread:$0]  %s958, 16, %s22, [#allocation8]
    $region93: #{deep_gcfx_forward.4} parent=1 // pred_fallthru
      _
    // Predicated region
    $region94: #{deep_gcfx_forward.4} parent=1 // pred_check
      _
    $region95: #{deep_gcfx_forward.4} parent=1 // pred_check_branch
      %962 = sbr.rel (0) target = $region97
    $region96: #{deep_gcfx_forward.4} parent=1 // pred_region
      _
    $region97: #{deep_gcfx_forward.4} parent=1 // pred_fallthru
      _
    // Predicated region
    $region98: #{deep_gcfx_forward.4} parent=1 // pred_check
      _
    $region99: #{deep_gcfx_forward.4} parent=1 // pred_check_branch
      %964 = sbr.rel (0) target = $region101
    $region100: #{deep_gcfx_forward.4} parent=1 // pred_region
      _
    $region101: #{deep_gcfx_forward.4} parent=1 // pred_fallthru
      _
    // Predicated region
    $region102: #{deep_gcfx_forward.4} parent=1 // pred_check
      _
    $region103: #{deep_gcfx_forward.4} parent=1 // pred_check_branch
      %966 = sbr.rel (0) target = $region105
    $region104: #{deep_gcfx_forward.4} parent=1 // pred_region
      %967 = dma.done [#allocation3], 256
    $region105: #{deep_gcfx_forward.4} parent=1 // pred_fallthru
      _
    // Predicated region
    $region106: #{deep_gcfx_forward.4} parent=1 // pred_check
      _
    $region107: #{deep_gcfx_forward.4} parent=1 // pred_check_branch
      %969 = sbr.rel (0) target = $region109
    $region108: #{deep_gcfx_forward.4} parent=1 // pred_region
      %970 = dma.done [#allocation5], 32
    $region109: #{deep_gcfx_forward.4} parent=1 // pred_fallthru
      _
    // Predicated region
    $region110: #{deep_gcfx_forward.4} parent=1 // pred_check
      _
    $region111: #{deep_gcfx_forward.4} parent=1 // pred_check_branch
      %972 = sbr.rel (0) target = $region113
    $region112: #{deep_gcfx_forward.4} parent=1 // pred_region
      %973 = dma.done [#allocation5], 16
    $region113: #{deep_gcfx_forward.4} parent=1 // pred_fallthru
      _
    // Predicated region
    $region114: #{deep_gcfx_forward.4} parent=1 // pred_check
      _
    $region115: #{deep_gcfx_forward.4} parent=1 // pred_check_branch
      %975 = sbr.rel (0) target = $region117
    $region116: #{deep_gcfx_forward.4} parent=1 // pred_region
      %976 = dma.done [#allocation8], 16
    $region117: #{deep_gcfx_forward.4} parent=1 // pred_fallthru
      _
    %977 = vsyncpa [#allocation3], 1
    %978 = vsyncpa [#allocation5], 1
    %979 = vsyncpa [#allocation8], 1

// kernel: deep_gcfx_forward.5
$region0: #{deep_gcfx_forward.5}
  #allocation0 [shape = 'u32[]', space=smem, size = 0x4, offset = 0x4, fixed_abs, tag = 'smem constant byte address 0x4 - core index']
  #allocation1 [shape = 'u32[144,128]{1,0:T(1,128)}', space=vmem, size = 0x12000, scoped, tag = 'internal scratch']
  %s0 = inlined_call_operand.vmem [shape: f32[32,32], index: 0, kind: input, shape index: {}]
  %s1 = inlined_call_operand.vmem [shape: f32[32,32], index: 1, kind: input, shape index: {}]
  %s2 = inlined_call_operand.vmem [shape: f32[48,32], index: 2, kind: input, shape index: {}]
  %s3 = inlined_call_operand.vmem [shape: f32[48,32], index: 3, kind: input, shape index: {}]
  %s4 = inlined_call_operand.vmem [shape: f32[32,32], index: 4, kind: input, shape index: {}]
  %s5 = inlined_call_operand.vmem [shape: f32[32,32], index: 5, kind: input, shape index: {}]
  %s6 = inlined_call_operand.vmem [shape: f32[48,32], index: 6, kind: input, shape index: {}]
  %s7 = inlined_call_operand.vmem [shape: f32[48,32], index: 7, kind: input, shape index: {}]
  %s8 = inlined_call_operand.hbm [shape: f32[1,1], index: 8, kind: output, shape index: {0}]
  %s9 = inlined_call_operand.hbm [shape: f32[1,1], index: 9, kind: output, shape index: {1}]
  %10 = xla_tuple %s8, %s9
  %s11 = sld [smem:[#allocation0]]
  $region50: #{deep_gcfx_forward.5} parent=0
    _
  %s13 = ssub.s32 1, %s11
  %s14 = scalar_select 0, %s13, %s11
  $region1: #{deep_gcfx_forward.5} parent=0
    #allocation2 [shape = 'u8[512]{0}', space=vmem, size = 0x400, scoped, tag = 'output window, operand 0, single buffered']
    #allocation3 [shape = 's32[1]{0}', space=sflag, size = 0x4, scoped, tag = 'scoped memory for deep_gcfx_forward.5']
    #allocation4 [shape = 'u8[512]{0}', space=vmem, size = 0x400, scoped, tag = 'output window, operand 1, single buffered']
    #allocation5 [shape = 's32[1]{0}', space=sflag, size = 0x4, scoped, tag = 'scoped memory for deep_gcfx_forward.5']
    %15 = vsyncpa [#allocation3], 0
    %16 = vsyncpa [#allocation5], 0
    // Predicated region
    $region2: #{deep_gcfx_forward.5} parent=1 // pred_check
      _
    $region3: #{deep_gcfx_forward.5} parent=1 // pred_check_branch
      %18 = sbr.rel (0) target = $region5
    $region4: #{deep_gcfx_forward.5} parent=1 // pred_region
      _
    $region5: #{deep_gcfx_forward.5} parent=1 // pred_fallthru
      _
    // Predicated region
    $region6: #{deep_gcfx_forward.5} parent=1 // pred_check
      _
    $region7: #{deep_gcfx_forward.5} parent=1 // pred_check_branch
      %20 = sbr.rel (0) target = $region9
    $region8: #{deep_gcfx_forward.5} parent=1 // pred_region
      _
    $region9: #{deep_gcfx_forward.5} parent=1 // pred_fallthru
      _
    // Predicated region
    $region10: #{deep_gcfx_forward.5} parent=1 // pred_check
      _
    $region11: #{deep_gcfx_forward.5} parent=1 // pred_check_branch
      %22 = sbr.rel (0) target = $region13
    $region12: #{deep_gcfx_forward.5} parent=1 // pred_region
      _
    $region13: #{deep_gcfx_forward.5} parent=1 // pred_fallthru
      _
    // Predicated region
    $region14: #{deep_gcfx_forward.5} parent=1 // pred_check
      _
    $region15: #{deep_gcfx_forward.5} parent=1 // pred_check_branch
      %24 = sbr.rel (0) target = $region17
    $region16: #{deep_gcfx_forward.5} parent=1 // pred_region
      _
    $region17: #{deep_gcfx_forward.5} parent=1 // pred_fallthru
      _
    // Predicated region
    $region18: #{deep_gcfx_forward.5} parent=1 // pred_check
      _
    $region19: #{deep_gcfx_forward.5} parent=1 // pred_check_branch
      %26 = sbr.rel (0) target = $region21
    $region20: #{deep_gcfx_forward.5} parent=1 // pred_region
      _
    $region21: #{deep_gcfx_forward.5} parent=1 // pred_fallthru
      _
    // Predicated region
    $region22: #{deep_gcfx_forward.5} parent=1 // pred_check
      _
    $region23: #{deep_gcfx_forward.5} parent=1 // pred_check_branch
      %28 = sbr.rel (0) target = $region25
    $region24: #{deep_gcfx_forward.5} parent=1 // pred_region
      _
    $region25: #{deep_gcfx_forward.5} parent=1 // pred_fallthru
      _
    // Predicated region
    $region26: #{deep_gcfx_forward.5} parent=1 // pred_check
      _
    $region27: #{deep_gcfx_forward.5} parent=1 // pred_check_branch
      %30 = sbr.rel (0) target = $region29
    $region28: #{deep_gcfx_forward.5} parent=1 // pred_region
      _
    $region29: #{deep_gcfx_forward.5} parent=1 // pred_fallthru
      _
    // Predicated region
    $region30: #{deep_gcfx_forward.5} parent=1 // pred_check
      _
    $region31: #{deep_gcfx_forward.5} parent=1 // pred_check_branch
      %32 = sbr.rel (0) target = $region33
    $region32: #{deep_gcfx_forward.5} parent=1 // pred_region
      _
    $region33: #{deep_gcfx_forward.5} parent=1 // pred_fallthru
      _
    %v33 = vld [vmem:[%s0] sm:$0xff]
    %v34 = vld [vmem:[%s0 + $0x8] sm:$0xff]
    %v35 = vld [vmem:[%s0 + $0x10] sm:$0xff]
    %v36 = vld [vmem:[%s0 + $0x18] sm:$0xff]
    %v37 = vld [vmem:[%s1] sm:$0xff]
    %v38 = vld [vmem:[%s1 + $0x8] sm:$0xff]
    %v39 = vld [vmem:[%s1 + $0x10] sm:$0xff]
    %v40 = vld [vmem:[%s1 + $0x18] sm:$0xff]
    %v41 = vmul.f32 %v33, %v37
    %v42 = vmul.f32 %v34, %v38
    %v43 = vmul.f32 %v35, %v39
    %v44 = vmul.f32 %v36, %v40
    %vm45 = vcmask 261120
    %v46 = vsel %vm45, %v41, 0.0
    %47 = vadd.xlane.f32.xlu0 %v46
    %v48 = vpop.xlane.xlu0 %47
    %v49 = vsel %vm45, %v42, 0.0
    %50 = vadd.xlane.f32.xlu0 %v49
    %v51 = vpop.xlane.xlu0 %50
    %v52 = vsel %vm45, %v43, 0.0
    %53 = vadd.xlane.f32.xlu0 %v52
    %v54 = vpop.xlane.xlu0 %53
    %v55 = vsel %vm45, %v44, 0.0
    %56 = vadd.xlane.f32.xlu0 %v55
    %v57 = vpop.xlane.xlu0 %56
    %v58 = vmul.f32 %v48, -1.0
    %v59 = vmul.f32 %v51, -1.0
    %v60 = vmul.f32 %v54, -1.0
    %v61 = vmul.f32 %v57, -1.0
    %v62 = vmax.f32 %v58, 0.0
    %v63 = vmax.f32 %v59, 0.0
    %v64 = vmax.f32 %v60, 0.0
    %v65 = vmax.f32 %v61, 0.0
    %v66 = vand.u32 2147483647, %v48
    %v67 = vand.u32 2147483647, %v51
    %v68 = vand.u32 2147483647, %v54
    %v69 = vand.u32 2147483647, %v57
    %v70 = vsub.f32 0.0, %v66
    %v71 = vsub.f32 0.0, %v67
    %v72 = vsub.f32 0.0, %v68
    %v73 = vsub.f32 0.0, %v69
    %v74 = vmul.f32 %v70, 1.442695
    %v75 = vpow.pop %v74
    %v76 = vmul.f32 %v71, 1.442695
    %v77 = vpow.pop %v76
    %v78 = vmul.f32 %v72, 1.442695
    %v79 = vpow.pop %v78
    %v80 = vmul.f32 %v73, 1.442695
    %v81 = vpow.pop %v80
    %v82 = vadd.f32 %v75, 1.0
    %v83 = vadd.f32 %v77, 1.0
    %v84 = vadd.f32 %v79, 1.0
    %v85 = vadd.f32 %v81, 1.0
    %v86 = vlog2.pop %v82
    %v87 = vmul.f32 %v86, 0.6931472
    %v88 = vlog2.pop %v83
    %v89 = vmul.f32 %v88, 0.6931472
    %v90 = vlog2.pop %v84
    %v91 = vmul.f32 %v90, 0.6931472
    %v92 = vlog2.pop %v85
    %v93 = vmul.f32 %v92, 0.6931472
    %v94 = vadd.f32 %v62, %v87
    %v95 = vadd.f32 %v63, %v89
    %v96 = vadd.f32 %v64, %v91
    %v97 = vadd.f32 %v65, %v93
    %v98 = vadd.f32 %v94, %v95
    %v99 = vadd.f32 %v98, %v96
    %v100 = vadd.f32 %v99, %v97
    %v101 = vrot.slane %v100, 4
    %v102 = vadd.f32 %v100, %v101
    %v103 = vrot.slane %v102, 2
    %v104 = vadd.f32 %v102, %v103
    %v105 = vrot.slane %v104, 1
    %v106 = vadd.f32 %v104, %v105
    %v107 = vrcp.pop 32.0
    %v108 = vmul.f32 %v106, %v107
    %v109 = vld [vmem:[%s2] sm:$0xff]
    %v110 = vld [vmem:[%s2 + $0x8] sm:$0xff]
    %v111 = vld [vmem:[%s2 + $0x10] sm:$0xff]
    %v112 = vld [vmem:[%s2 + $0x18] sm:$0xff]
    %v113 = vld [vmem:[%s2 + $0x20] sm:$0xff]
    %v114 = vld [vmem:[%s2 + $0x28] sm:$0xff]
    %v115 = vld [vmem:[%s3] sm:$0xff]
    %v116 = vld [vmem:[%s3 + $0x8] sm:$0xff]
    %v117 = vld [vmem:[%s3 + $0x10] sm:$0xff]
    %v118 = vld [vmem:[%s3 + $0x18] sm:$0xff]
    %v119 = vld [vmem:[%s3 + $0x20] sm:$0xff]
    %v120 = vld [vmem:[%s3 + $0x28] sm:$0xff]
    %v121 = vmul.f32 %v109, %v115
    %v122 = vmul.f32 %v110, %v116
    %v123 = vmul.f32 %v111, %v117
    %v124 = vmul.f32 %v112, %v118
    %v125 = vmul.f32 %v113, %v119
    %v126 = vmul.f32 %v114, %v120
    %v127 = vsel %vm45, %v121, 0.0
    %128 = vadd.xlane.f32.xlu0 %v127
    %v129 = vpop.xlane.xlu0 %128
    %v130 = vsel %vm45, %v122, 0.0
    %131 = vadd.xlane.f32.xlu0 %v130
    %v132 = vpop.xlane.xlu0 %131
    %v133 = vsel %vm45, %v123, 0.0
    %134 = vadd.xlane.f32.xlu0 %v133
    %v135 = vpop.xlane.xlu0 %134
    %v136 = vsel %vm45, %v124, 0.0
    %137 = vadd.xlane.f32.xlu0 %v136
    %v138 = vpop.xlane.xlu0 %137
    %v139 = vsel %vm45, %v125, 0.0
    %140 = vadd.xlane.f32.xlu0 %v139
    %v141 = vpop.xlane.xlu0 %140
    %v142 = vsel %vm45, %v126, 0.0
    %143 = vadd.xlane.f32.xlu0 %v142
    %v144 = vpop.xlane.xlu0 %143
    %v145 = vmax.f32 %v129, 0.0
    %v146 = vmax.f32 %v132, 0.0
    %v147 = vmax.f32 %v135, 0.0
    %v148 = vmax.f32 %v138, 0.0
    %v149 = vmax.f32 %v141, 0.0
    %v150 = vmax.f32 %v144, 0.0
    %v151 = vand.u32 2147483647, %v129
    %v152 = vand.u32 2147483647, %v132
    %v153 = vand.u32 2147483647, %v135
    %v154 = vand.u32 2147483647, %v138
    %v155 = vand.u32 2147483647, %v141
    %v156 = vand.u32 2147483647, %v144
    %v157 = vsub.f32 0.0, %v151
    %v158 = vsub.f32 0.0, %v152
    %v159 = vsub.f32 0.0, %v153
    %v160 = vsub.f32 0.0, %v154
    %v161 = vsub.f32 0.0, %v155
    %v162 = vsub.f32 0.0, %v156
    %v163 = vmul.f32 %v157, 1.442695
    %v164 = vpow.pop %v163
    %v165 = vmul.f32 %v158, 1.442695
    %v166 = vpow.pop %v165
    %v167 = vmul.f32 %v159, 1.442695
    %v168 = vpow.pop %v167
    %v169 = vmul.f32 %v160, 1.442695
    %v170 = vpow.pop %v169
    %v171 = vmul.f32 %v161, 1.442695
    %v172 = vpow.pop %v171
    %v173 = vmul.f32 %v162, 1.442695
    %v174 = vpow.pop %v173
    %v175 = vadd.f32 %v164, 1.0
    %v176 = vadd.f32 %v166, 1.0
    %v177 = vadd.f32 %v168, 1.0
    %v178 = vadd.f32 %v170, 1.0
    %v179 = vadd.f32 %v172, 1.0
    %v180 = vadd.f32 %v174, 1.0
    %v181 = vlog2.pop %v175
    %v182 = vmul.f32 %v181, 0.6931472
    %v183 = vlog2.pop %v176
    %v184 = vmul.f32 %v183, 0.6931472
    %v185 = vlog2.pop %v177
    %v186 = vmul.f32 %v185, 0.6931472
    %v187 = vlog2.pop %v178
    %v188 = vmul.f32 %v187, 0.6931472
    %v189 = vlog2.pop %v179
    %v190 = vmul.f32 %v189, 0.6931472
    %v191 = vlog2.pop %v180
    %v192 = vmul.f32 %v191, 0.6931472
    %v193 = vadd.f32 %v145, %v182
    %v194 = vadd.f32 %v146, %v184
    %v195 = vadd.f32 %v147, %v186
    %v196 = vadd.f32 %v148, %v188
    %v197 = vadd.f32 %v149, %v190
    %v198 = vadd.f32 %v150, %v192
    %v199 = vadd.f32 %v193, %v194
    %v200 = vadd.f32 %v199, %v195
    %v201 = vadd.f32 %v200, %v196
    %v202 = vadd.f32 %v201, %v197
    %v203 = vadd.f32 %v202, %v198
    %v204 = vrot.slane %v203, 4
    %v205 = vadd.f32 %v203, %v204
    %v206 = vrot.slane %v205, 2
    %v207 = vadd.f32 %v205, %v206
    %v208 = vrot.slane %v207, 1
    %v209 = vadd.f32 %v207, %v208
    %v210 = vrcp.pop 48.0
    %v211 = vmul.f32 %v209, %v210
    %v212 = vadd.f32 %v108, %v211
    %vm213 = vcmask 0
    %214 = vst.msk [vmem:[#allocation2] sm:$0x1] %vm213, %v212
    %v215 = vld [vmem:[%s4] sm:$0xff]
    %v216 = vld [vmem:[%s4 + $0x8] sm:$0xff]
    %v217 = vld [vmem:[%s4 + $0x10] sm:$0xff]
    %v218 = vld [vmem:[%s4 + $0x18] sm:$0xff]
    %v219 = vld [vmem:[%s5] sm:$0xff]
    %v220 = vld [vmem:[%s5 + $0x8] sm:$0xff]
    %v221 = vld [vmem:[%s5 + $0x10] sm:$0xff]
    %v222 = vld [vmem:[%s5 + $0x18] sm:$0xff]
    %v223 = vmul.f32 %v215, %v219
    %v224 = vmul.f32 %v216, %v220
    %v225 = vmul.f32 %v217, %v221
    %v226 = vmul.f32 %v218, %v222
    %v227 = vsel %vm45, %v223, 0.0
    %228 = vadd.xlane.f32.xlu0 %v227
    %v229 = vpop.xlane.xlu0 %228
    %v230 = vsel %vm45, %v224, 0.0
    %231 = vadd.xlane.f32.xlu0 %v230
    %v232 = vpop.xlane.xlu0 %231
    %v233 = vsel %vm45, %v225, 0.0
    %234 = vadd.xlane.f32.xlu0 %v233
    %v235 = vpop.xlane.xlu0 %234
    %v236 = vsel %vm45, %v226, 0.0
    %237 = vadd.xlane.f32.xlu0 %v236
    %v238 = vpop.xlane.xlu0 %237
    %v239 = vmul.f32 %v229, -1.0
    %v240 = vmul.f32 %v232, -1.0
    %v241 = vmul.f32 %v235, -1.0
    %v242 = vmul.f32 %v238, -1.0
    %v243 = vmax.f32 %v239, 0.0
    %v244 = vmax.f32 %v240, 0.0
    %v245 = vmax.f32 %v241, 0.0
    %v246 = vmax.f32 %v242, 0.0
    %v247 = vand.u32 2147483647, %v229
    %v248 = vand.u32 2147483647, %v232
    %v249 = vand.u32 2147483647, %v235
    %v250 = vand.u32 2147483647, %v238
    %v251 = vsub.f32 0.0, %v247
    %v252 = vsub.f32 0.0, %v248
    %v253 = vsub.f32 0.0, %v249
    %v254 = vsub.f32 0.0, %v250
    %v255 = vmul.f32 %v251, 1.442695
    %v256 = vpow.pop %v255
    %v257 = vmul.f32 %v252, 1.442695
    %v258 = vpow.pop %v257
    %v259 = vmul.f32 %v253, 1.442695
    %v260 = vpow.pop %v259
    %v261 = vmul.f32 %v254, 1.442695
    %v262 = vpow.pop %v261
    %v263 = vadd.f32 %v256, 1.0
    %v264 = vadd.f32 %v258, 1.0
    %v265 = vadd.f32 %v260, 1.0
    %v266 = vadd.f32 %v262, 1.0
    %v267 = vlog2.pop %v263
    %v268 = vmul.f32 %v267, 0.6931472
    %v269 = vlog2.pop %v264
    %v270 = vmul.f32 %v269, 0.6931472
    %v271 = vlog2.pop %v265
    %v272 = vmul.f32 %v271, 0.6931472
    %v273 = vlog2.pop %v266
    %v274 = vmul.f32 %v273, 0.6931472
    %v275 = vadd.f32 %v243, %v268
    %v276 = vadd.f32 %v244, %v270
    %v277 = vadd.f32 %v245, %v272
    %v278 = vadd.f32 %v246, %v274
    %v279 = vadd.f32 %v275, %v276
    %v280 = vadd.f32 %v279, %v277
    %v281 = vadd.f32 %v280, %v278
    %v282 = vrot.slane %v281, 4
    %v283 = vadd.f32 %v281, %v282
    %v284 = vrot.slane %v283, 2
    %v285 = vadd.f32 %v283, %v284
    %v286 = vrot.slane %v285, 1
    %v287 = vadd.f32 %v285, %v286
    %v288 = vmul.f32 %v287, %v107
    %v289 = vld [vmem:[%s6] sm:$0xff]
    %v290 = vld [vmem:[%s6 + $0x8] sm:$0xff]
    %v291 = vld [vmem:[%s6 + $0x10] sm:$0xff]
    %v292 = vld [vmem:[%s6 + $0x18] sm:$0xff]
    %v293 = vld [vmem:[%s6 + $0x20] sm:$0xff]
    %v294 = vld [vmem:[%s6 + $0x28] sm:$0xff]
    %v295 = vld [vmem:[%s7] sm:$0xff]
    %v296 = vld [vmem:[%s7 + $0x8] sm:$0xff]
    %v297 = vld [vmem:[%s7 + $0x10] sm:$0xff]
    %v298 = vld [vmem:[%s7 + $0x18] sm:$0xff]
    %v299 = vld [vmem:[%s7 + $0x20] sm:$0xff]
    %v300 = vld [vmem:[%s7 + $0x28] sm:$0xff]
    %v301 = vmul.f32 %v289, %v295
    %v302 = vmul.f32 %v290, %v296
    %v303 = vmul.f32 %v291, %v297
    %v304 = vmul.f32 %v292, %v298
    %v305 = vmul.f32 %v293, %v299
    %v306 = vmul.f32 %v294, %v300
    %v307 = vsel %vm45, %v301, 0.0
    %308 = vadd.xlane.f32.xlu0 %v307
    %v309 = vpop.xlane.xlu0 %308
    %v310 = vsel %vm45, %v302, 0.0
    %311 = vadd.xlane.f32.xlu0 %v310
    %v312 = vpop.xlane.xlu0 %311
    %v313 = vsel %vm45, %v303, 0.0
    %314 = vadd.xlane.f32.xlu0 %v313
    %v315 = vpop.xlane.xlu0 %314
    %v316 = vsel %vm45, %v304, 0.0
    %317 = vadd.xlane.f32.xlu0 %v316
    %v318 = vpop.xlane.xlu0 %317
    %v319 = vsel %vm45, %v305, 0.0
    %320 = vadd.xlane.f32.xlu0 %v319
    %v321 = vpop.xlane.xlu0 %320
    %v322 = vsel %vm45, %v306, 0.0
    %323 = vadd.xlane.f32.xlu0 %v322
    %v324 = vpop.xlane.xlu0 %323
    %v325 = vmax.f32 %v309, 0.0
    %v326 = vmax.f32 %v312, 0.0
    %v327 = vmax.f32 %v315, 0.0
    %v328 = vmax.f32 %v318, 0.0
    %v329 = vmax.f32 %v321, 0.0
    %v330 = vmax.f32 %v324, 0.0
    %v331 = vand.u32 2147483647, %v309
    %v332 = vand.u32 2147483647, %v312
    %v333 = vand.u32 2147483647, %v315
    %v334 = vand.u32 2147483647, %v318
    %v335 = vand.u32 2147483647, %v321
    %v336 = vand.u32 2147483647, %v324
    %v337 = vsub.f32 0.0, %v331
    %v338 = vsub.f32 0.0, %v332
    %v339 = vsub.f32 0.0, %v333
    %v340 = vsub.f32 0.0, %v334
    %v341 = vsub.f32 0.0, %v335
    %v342 = vsub.f32 0.0, %v336
    %v343 = vmul.f32 %v337, 1.442695
    %v344 = vpow.pop %v343
    %v345 = vmul.f32 %v338, 1.442695
    %v346 = vpow.pop %v345
    %v347 = vmul.f32 %v339, 1.442695
    %v348 = vpow.pop %v347
    %v349 = vmul.f32 %v340, 1.442695
    %v350 = vpow.pop %v349
    %v351 = vmul.f32 %v341, 1.442695
    %v352 = vpow.pop %v351
    %v353 = vmul.f32 %v342, 1.442695
    %v354 = vpow.pop %v353
    %v355 = vadd.f32 %v344, 1.0
    %v356 = vadd.f32 %v346, 1.0
    %v357 = vadd.f32 %v348, 1.0
    %v358 = vadd.f32 %v350, 1.0
    %v359 = vadd.f32 %v352, 1.0
    %v360 = vadd.f32 %v354, 1.0
    %v361 = vlog2.pop %v355
    %v362 = vmul.f32 %v361, 0.6931472
    %v363 = vlog2.pop %v356
    %v364 = vmul.f32 %v363, 0.6931472
    %v365 = vlog2.pop %v357
    %v366 = vmul.f32 %v365, 0.6931472
    %v367 = vlog2.pop %v358
    %v368 = vmul.f32 %v367, 0.6931472
    %v369 = vlog2.pop %v359
    %v370 = vmul.f32 %v369, 0.6931472
    %v371 = vlog2.pop %v360
    %v372 = vmul.f32 %v371, 0.6931472
    %v373 = vadd.f32 %v325, %v362
    %v374 = vadd.f32 %v326, %v364
    %v375 = vadd.f32 %v327, %v366
    %v376 = vadd.f32 %v328, %v368
    %v377 = vadd.f32 %v329, %v370
    %v378 = vadd.f32 %v330, %v372
    %v379 = vadd.f32 %v373, %v374
    %v380 = vadd.f32 %v379, %v375
    %v381 = vadd.f32 %v380, %v376
    %v382 = vadd.f32 %v381, %v377
    %v383 = vadd.f32 %v382, %v378
    %v384 = vrot.slane %v383, 4
    %v385 = vadd.f32 %v383, %v384
    %v386 = vrot.slane %v385, 2
    %v387 = vadd.f32 %v385, %v386
    %v388 = vrot.slane %v387, 1
    %v389 = vadd.f32 %v387, %v388
    %v390 = vmul.f32 %v389, %v210
    %v391 = vadd.f32 %v288, %v390
    %392 = vst.msk [vmem:[#allocation4] sm:$0x1] %vm213, %v391
    // Predicated region
    $region34: #{deep_gcfx_forward.5} parent=1 // pred_check
      _
    $region35: #{deep_gcfx_forward.5} parent=1 // pred_check_branch
      %394 = sbr.rel (0) target = $region37
    $region36: #{deep_gcfx_forward.5} parent=1 // pred_region
      %s396 = ssub.s32 16, 16
      %397 = vsyncadd [#allocation3], %s396
      %s399 = sshll.u32 [#allocation2], 4
      %s400 = int_to_ptr.vmem [resolvable:$true] %s399
      %402 = dma.vmem_to_hbm [thread:$0]  %s400, 16, %s8, [#allocation3]
    $region37: #{deep_gcfx_forward.5} parent=1 // pred_fallthru
      _
    // Predicated region
    $region38: #{deep_gcfx_forward.5} parent=1 // pred_check
      _
    $region39: #{deep_gcfx_forward.5} parent=1 // pred_check_branch
      %404 = sbr.rel (0) target = $region41
    $region40: #{deep_gcfx_forward.5} parent=1 // pred_region
      %s406 = ssub.s32 16, 16
      %407 = vsyncadd [#allocation5], %s406
      %s409 = sshll.u32 [#allocation4], 4
      %s410 = int_to_ptr.vmem [resolvable:$true] %s409
      %412 = dma.vmem_to_hbm [thread:$0]  %s410, 16, %s9, [#allocation5]
    $region41: #{deep_gcfx_forward.5} parent=1 // pred_fallthru
      _
    // Predicated region
    $region42: #{deep_gcfx_forward.5} parent=1 // pred_check
      _
    $region43: #{deep_gcfx_forward.5} parent=1 // pred_check_branch
      %414 = sbr.rel (0) target = $region45
    $region44: #{deep_gcfx_forward.5} parent=1 // pred_region
      %415 = dma.done [#allocation3], 16
    $region45: #{deep_gcfx_forward.5} parent=1 // pred_fallthru
      _
    // Predicated region
    $region46: #{deep_gcfx_forward.5} parent=1 // pred_check
      _
    $region47: #{deep_gcfx_forward.5} parent=1 // pred_check_branch
      %417 = sbr.rel (0) target = $region49
    $region48: #{deep_gcfx_forward.5} parent=1 // pred_region
      %418 = dma.done [#allocation5], 16
    $region49: #{deep_gcfx_forward.5} parent=1 // pred_fallthru
      _
    %419 = vsyncpa [#allocation3], 1
    %420 = vsyncpa [#allocation5], 1

</llo_original>
